<compile_context>
chip_gen: v6e
topology: v6e:2x2x1
jax: 0.10.0
libtpu: 0.0.40
codegen_flags: <defaults>
</compile_context>

<pallas_src>
import jax
import jax.numpy as jnp
from jax import lax
from jax.experimental import pallas as pl
from jax.experimental.pallas import tpu as pltpu
import numpy as np


def lstm_tracker_kernel(x_ref, w_ih_ref, w_hh_ref, b_ref, w_fc_ref, b_fc_ref,
                        out_ref, gx_ref, h_hist_ref):
    """Whole LSTMTracker forward in one kernel invocation (time-major inside).

    x_ref:     (T, B, D)    input sequence, time-major
    w_ih_ref:  (D, 4H)      W_ih^T, gate-column order [i, f, o, g] (pre-permuted)
    w_hh_ref:  (H, 4H)      W_hh^T, same gate-column order
    b_ref:     (1, 4H)      b_ih + b_hh, same gate-column order
    w_fc_ref:  (H, O)       fc.weight^T
    b_fc_ref:  (1, O)       fc.bias
    out_ref:   (T, B, O)    output (wrapper transposes back to batch-first)
    gx_ref:    (T, B, 4H)   VMEM scratch: hoisted input-gate pre-activations
    h_hist_ref:(T, B, H)    VMEM scratch: h_t log for the fused epilogue FC
    """
    T, B, D = x_ref.shape
    H = w_hh_ref.shape[0]
    O = w_fc_ref.shape[1]

    # ---- Prologue: hoist the input projection out of the recurrence.
    # One (T*B, D) @ (D, 4H) matmul replaces T tiny per-step matmuls; result is
    # staged in VMEM scratch so it is not live in vregs across the unroll.
    x_flat = x_ref[...].reshape(T * B, D)
    gx = (jnp.dot(x_flat, w_ih_ref[...], preferred_element_type=jnp.float32)
          + b_ref[...])
    gx_ref[...] = gx.reshape(T, B, 4 * H)

    # ---- Recurrence: serial in T, fully unrolled via fori_loop(unroll=True).
    # Per-step critical path: one (8,H)@(H,4H) MXU push (W_hh streamed from VMEM,
    # not pinned in vregs), one sigmoid over (8,3H) + one tanh over (8,H) on the
    # EUP, VPU state combine, and a single contiguous (8,H) h store.
    # TODO(synk): for further hand-tuning, hold W_hh resident in the MXU with
    # pltpu.matmul_push_rhs once + matmul_acc_lhs/matmul_pop per step.
    # NOTE: with H=64 the gate slices are half-vreg lane slices; if H is scaled
    # up, pad H to a multiple of 128 so every gate slice is vreg-aligned.
    def step(t, carry):
        h, c = carry
        gates = gx_ref[t] + jnp.dot(h, w_hh_ref[...],
                                    preferred_element_type=jnp.float32)
        sig = jax.nn.sigmoid(gates[:, :3 * H])   # fused [i | f | o] sigmoid
        g_g = jnp.tanh(gates[:, 3 * H:])         # cell candidate
        i_g = sig[:, 0 * H:1 * H]
        f_g = sig[:, 1 * H:2 * H]
        o_g = sig[:, 2 * H:3 * H]
        c = f_g * c + i_g * g_g
        h = o_g * jnp.tanh(c)
        h_hist_ref[t] = h                        # contiguous (B, H) store
        return (h, c)

    h0 = jnp.zeros((B, H), jnp.float32)
    c0 = jnp.zeros((B, H), jnp.float32)
    lax.fori_loop(0, T, step, (h0, c0), unroll=True)

    # ---- Epilogue: single fused FC over all timesteps + one output store.
    h_all = h_hist_ref[...].reshape(T * B, H)
    out = (jnp.dot(h_all, w_fc_ref[...], preferred_element_type=jnp.float32)
           + b_fc_ref[...])
    out_ref[...] = out.reshape(T, B, O).astype(out_ref.dtype)


def _permute_gate_cols(a, H):
    """Reorder gate columns along the last (4H) axis: [i,f,g,o] -> [i,f,o,g].

    Column permutation of a matmul RHS does not change any per-column value,
    so this is numerically exact; it only lets the kernel fuse the 3 sigmoids.
    """
    i = a[..., 0 * H:1 * H]
    f = a[..., 1 * H:2 * H]
    g = a[..., 2 * H:3 * H]
    o = a[..., 3 * H:4 * H]
    return jnp.concatenate([i, f, o, g], axis=-1)


def lstm_tracker_forward(x, params):
    """Pallas forward pass equivalent to LSTMTracker.forward.

    x: (B, T, D) float32, batch-first (same as PyTorch)
    returns: (B, T, O) float32
    """
    B, T, D = x.shape
    H = params["w_hh_t"].shape[0]
    O = params["w_fc_t"].shape[1]

    # One-time gate-column permutation [i,f,g,o] -> [i,f,o,g] (zero-cost wrapper
    # change; must be applied consistently to W_ih, W_hh and the bias).
    w_ih_t = _permute_gate_cols(params["w_ih_t"], H)   # (D, 4H)
    w_hh_t = _permute_gate_cols(params["w_hh_t"], H)   # (H, 4H)
    b = _permute_gate_cols(params["b"], H)             # (1, 4H)
    w_fc_t = params["w_fc_t"]                          # (H, O)
    b_fc = params["b_fc"]                              # (1, O)

    # Time-major inside the kernel; the (8,8,4) transposes are negligible.
    x_tm = jnp.transpose(x, (1, 0, 2))                 # (T, B, D)

    vmem_spec = pl.BlockSpec(memory_space=pltpu.MemorySpace.VMEM)

    out_tm = pl.pallas_call(
        lstm_tracker_kernel,
        out_shape=jax.ShapeDtypeStruct((T, B, O), jnp.float32),
        in_specs=[vmem_spec] * 6,
        out_specs=vmem_spec,
        scratch_shapes=[
            pltpu.VMEM((T, B, 4 * H), jnp.float32),    # gx staging
            pltpu.VMEM((T, B, H), jnp.float32),        # h history
        ],
    )(x_tm, w_ih_t, w_hh_t, b, w_fc_t, b_fc)

    return jnp.transpose(out_tm, (1, 0, 2))            # back to (B, T, O)
    # TODO(synk): scaling path — for large B, add a leading grid axis over batch
    # with dimension_semantics=("parallel", ...) (uses both v7x TensorCores; the
    # recurrence is embarrassingly parallel in B), stream x / h-history via
    # BlockSpecs, and size tiles against v7x's 64 MiB physical / ~32 MiB scoped
    # VMEM via pltpu.CompilerParams(vmem_limit_bytes=...). Optional bf16 matmul
    # inputs (f32 accumulation) for v6e/v7x would exceed the 1e-5 tolerance, so
    # it is not enabled here; on v5e keep all nonlinearities in f32 regardless.


def init_params(key, input_dim, lstm_units, output_dim):
    """Deterministic init matching PyTorch default uniform(-1/sqrt(H), 1/sqrt(H)).

    Returned params use PyTorch's native gate order [i, f, g, o]; the kernel
    wrapper applies the [i, f, o, g] permutation internally.
    """
    H, D, O = lstm_units, input_dim, output_dim
    k = 1.0 / np.sqrt(H)
    keys = jax.random.split(key, 6)
    w_ih = jax.random.uniform(keys[0], (4 * H, D), jnp.float32, -k, k)  # (4H, D)
    w_hh = jax.random.uniform(keys[1], (4 * H, H), jnp.float32, -k, k)  # (4H, H)
    b_ih = jax.random.uniform(keys[2], (4 * H,), jnp.float32, -k, k)
    b_hh = jax.random.uniform(keys[3], (4 * H,), jnp.float32, -k, k)
    w_fc = jax.random.uniform(keys[4], (O, H), jnp.float32, -k, k)      # (O, H)
    b_fc = jax.random.uniform(keys[5], (O,), jnp.float32, -k, k)
    return {
        "w_ih_t": w_ih.T,                       # (D, 4H)
        "w_hh_t": w_hh.T,                       # (H, 4H)
        "b": (b_ih + b_hh)[None, :],            # (1, 4H)
        "w_fc_t": w_fc.T,                       # (H, O)
        "b_fc": b_fc[None, :],                  # (1, O)
    }


def lstm_tracker_reference(x, params):
    """Pure-JAX reference (lax.scan LSTM, PyTorch gate order) for correctness."""
    B, T, D = x.shape
    H = params["w_hh_t"].shape[0]

    def step(carry, x_t):
        h, c = carry
        gates = x_t @ params["w_ih_t"] + h @ params["w_hh_t"] + params["b"]
        i = jax.nn.sigmoid(gates[:, 0 * H:1 * H])
        f = jax.nn.sigmoid(gates[:, 1 * H:2 * H])
        g = jnp.tanh(gates[:, 2 * H:3 * H])
        o = jax.nn.sigmoid(gates[:, 3 * H:4 * H])
        c = f * c + i * g
        h = o * jnp.tanh(c)
        return (h, c), h

    h0 = jnp.zeros((B, H), jnp.float32)
    c0 = jnp.zeros((B, H), jnp.float32)
    _, hs = lax.scan(step, (h0, c0), jnp.transpose(x, (1, 0, 2)))
    out = hs @ params["w_fc_t"] + params["b_fc"]
    return jnp.transpose(out, (1, 0, 2))


if __name__ == "__main__":
    # Shapes consistent with LSTMTracker defaults (input_dim=4, output_dim=4,
    # lstm_units=64); B=8 fills the 8 TPU sublanes, T=8 short sequence.
    B, T, D, H, O = 8, 8, 4, 64, 4

    key = jax.random.PRNGKey(0)
    k_x, k_p = jax.random.split(key)
    x = jax.random.normal(k_x, (B, T, D), jnp.float32)
    params = init_params(k_p, input_dim=D, lstm_units=H, output_dim=O)

    out = jax.block_until_ready(lstm_tracker_forward(x, params))
    ref = jax.block_until_ready(lstm_tracker_reference(x, params))

    assert out.shape == (B, T, O), out.shape
    np.testing.assert_allclose(np.asarray(out), np.asarray(ref),
                               rtol=1e-5, atol=1e-5)
    print("KERNEL_OK")
</pallas_src>

<mosaic_0001>
module attributes {stable_mosaic.version = 11 : i64} {
  func.func @lstm_tracker_kernel(%arg0: memref<8x8x4xf32, #tpu.memory_space<vmem>>, %arg1: memref<4x256xf32, #tpu.memory_space<vmem>>, %arg2: memref<64x256xf32, #tpu.memory_space<vmem>>, %arg3: memref<1x256xf32, #tpu.memory_space<vmem>>, %arg4: memref<64x4xf32, #tpu.memory_space<vmem>>, %arg5: memref<1x4xf32, #tpu.memory_space<vmem>>, %arg6: memref<8x8x4xf32, #tpu.memory_space<vmem>>, %arg7: memref<8x8x256xf32, #tpu.memory_space<vmem>>, %arg8: memref<8x8x64xf32, #tpu.memory_space<vmem>>) attributes {dimension_semantics = [], scalar_prefetch = 0 : i64, scratch_operands = 2 : i64, tpu.core_type = #tpu.core_type<tc>} {
    %c0 = arith.constant 0 : index
    %c0_0 = arith.constant 0 : index
    %c0_1 = arith.constant 0 : index
    %0 = vector.load %arg0[%c0, %c0_0, %c0_1] : memref<8x8x4xf32, #tpu.memory_space<vmem>>, vector<8x8x4xf32>
    %1 = vector.shape_cast %0 : vector<8x8x4xf32> to vector<64x4xf32>
    %c0_2 = arith.constant 0 : index
    %c0_3 = arith.constant 0 : index
    %2 = vector.load %arg1[%c0_2, %c0_3] : memref<4x256xf32, #tpu.memory_space<vmem>>, vector<4x256xf32>
    %cst = arith.constant dense<0.000000e+00> : vector<64x256xf32>
    %3 = tpu.matmul %1, %2, %cst {dimension_numbers = #tpu.dot_dimension_numbers<[1], [0], [0], [1], [0, 0, 1, 1], [], []>} : vector<64x4xf32>, vector<4x256xf32>, vector<64x256xf32> -> vector<64x256xf32>
    %c0_4 = arith.constant 0 : index
    %c0_5 = arith.constant 0 : index
    %4 = vector.load %arg3[%c0_4, %c0_5] : memref<1x256xf32, #tpu.memory_space<vmem>>, vector<1x256xf32>
    %5 = vector.broadcast %4 : vector<1x256xf32> to vector<64x256xf32>
    %6 = arith.addf %3, %5 : vector<64x256xf32>
    %7 = vector.shape_cast %6 : vector<64x256xf32> to vector<8x8x256xf32>
    %c0_6 = arith.constant 0 : index
    %c0_7 = arith.constant 0 : index
    %c0_8 = arith.constant 0 : index
    %8 = vector.load %arg7[%c0_6, %c0_7, %c0_8] : memref<8x8x256xf32, #tpu.memory_space<vmem>>, vector<8x8x256xf32>
    tpu.vector_store %arg7[%c0_6, %c0_7, %c0_8], %7 {strides = array<i32>} : memref<8x8x256xf32, #tpu.memory_space<vmem>>, vector<8x8x256xf32>,
    %cst_9 = arith.constant 0.000000e+00 : f32
    %9 = vector.broadcast %cst_9 : f32 to vector<8x64xf32>
    %cst_10 = arith.constant 0.000000e+00 : f32
    %10 = vector.broadcast %cst_10 : f32 to vector<8x64xf32>
    %c0_i32 = arith.constant 0 : i32
    %11 = arith.index_cast %c0_i32 : i32 to index
    %c0_11 = arith.constant 0 : index
    %c0_12 = arith.constant 0 : index
    %12 = vector.load %arg7[%11, %c0_11, %c0_12] : memref<8x8x256xf32, #tpu.memory_space<vmem>>, vector<1x8x256xf32>
    %13 = vector.shape_cast %12 : vector<1x8x256xf32> to vector<8x256xf32>
    %c0_13 = arith.constant 0 : index
    %c0_14 = arith.constant 0 : index
    %14 = vector.load %arg2[%c0_13, %c0_14] : memref<64x256xf32, #tpu.memory_space<vmem>>, vector<64x256xf32>
    %cst_15 = arith.constant dense<0.000000e+00> : vector<8x256xf32>
    %15 = tpu.matmul %9, %14, %cst_15 {dimension_numbers = #tpu.dot_dimension_numbers<[1], [0], [0], [1], [0, 0, 1, 1], [], []>} : vector<8x64xf32>, vector<64x256xf32>, vector<8x256xf32> -> vector<8x256xf32>
    %16 = arith.addf %13, %15 : vector<8x256xf32>
    %17 = vector.extract_strided_slice %16 {offsets = [0, 0], sizes = [8, 192], strides = [1, 1]} : vector<8x256xf32> to vector<8x192xf32>
    %18 = arith.negf %17 : vector<8x192xf32>
    %19 = math.exp %18 : vector<8x192xf32>
    %cst_16 = arith.constant 1.000000e+00 : f32
    %20 = vector.broadcast %cst_16 : f32 to vector<8x192xf32>
    %21 = arith.addf %20, %19 : vector<8x192xf32>
    %22 = arith.divf %20, %21 : vector<8x192xf32>
    %23 = vector.extract_strided_slice %16 {offsets = [0, 192], sizes = [8, 64], strides = [1, 1]} : vector<8x256xf32> to vector<8x64xf32>
    %24 = math.tanh %23 : vector<8x64xf32>
    %25 = vector.extract_strided_slice %22 {offsets = [0, 0], sizes = [8, 64], strides = [1, 1]} : vector<8x192xf32> to vector<8x64xf32>
    %26 = vector.extract_strided_slice %22 {offsets = [0, 64], sizes = [8, 64], strides = [1, 1]} : vector<8x192xf32> to vector<8x64xf32>
    %27 = vector.extract_strided_slice %22 {offsets = [0, 128], sizes = [8, 64], strides = [1, 1]} : vector<8x192xf32> to vector<8x64xf32>
    %28 = arith.mulf %26, %10 : vector<8x64xf32>
    %29 = arith.mulf %25, %24 : vector<8x64xf32>
    %30 = arith.addf %28, %29 : vector<8x64xf32>
    %31 = math.tanh %30 : vector<8x64xf32>
    %32 = arith.mulf %27, %31 : vector<8x64xf32>
    %33 = arith.index_cast %c0_i32 : i32 to index
    %c0_17 = arith.constant 0 : index
    %c0_18 = arith.constant 0 : index
    %34 = vector.load %arg8[%33, %c0_17, %c0_18] : memref<8x8x64xf32, #tpu.memory_space<vmem>>, vector<1x8x64xf32>
    %35 = vector.shape_cast %34 : vector<1x8x64xf32> to vector<8x64xf32>
    %36 = vector.shape_cast %32 : vector<8x64xf32> to vector<1x8x64xf32>
    tpu.vector_store %arg8[%33, %c0_17, %c0_18], %36 {strides = array<i32>} : memref<8x8x64xf32, #tpu.memory_space<vmem>>, vector<1x8x64xf32>,
    %c1_i32 = arith.constant 1 : i32
    %37 = arith.index_cast %c1_i32 : i32 to index
    %c0_19 = arith.constant 0 : index
    %c0_20 = arith.constant 0 : index
    %38 = vector.load %arg7[%37, %c0_19, %c0_20] : memref<8x8x256xf32, #tpu.memory_space<vmem>>, vector<1x8x256xf32>
    %39 = vector.shape_cast %38 : vector<1x8x256xf32> to vector<8x256xf32>
    %c0_21 = arith.constant 0 : index
    %c0_22 = arith.constant 0 : index
    %40 = vector.load %arg2[%c0_21, %c0_22] : memref<64x256xf32, #tpu.memory_space<vmem>>, vector<64x256xf32>
    %cst_23 = arith.constant dense<0.000000e+00> : vector<8x256xf32>
    %41 = tpu.matmul %32, %40, %cst_23 {dimension_numbers = #tpu.dot_dimension_numbers<[1], [0], [0], [1], [0, 0, 1, 1], [], []>} : vector<8x64xf32>, vector<64x256xf32>, vector<8x256xf32> -> vector<8x256xf32>
    %42 = arith.addf %39, %41 : vector<8x256xf32>
    %43 = vector.extract_strided_slice %42 {offsets = [0, 0], sizes = [8, 192], strides = [1, 1]} : vector<8x256xf32> to vector<8x192xf32>
    %44 = arith.negf %43 : vector<8x192xf32>
    %45 = math.exp %44 : vector<8x192xf32>
    %cst_24 = arith.constant 1.000000e+00 : f32
    %46 = vector.broadcast %cst_24 : f32 to vector<8x192xf32>
    %47 = arith.addf %46, %45 : vector<8x192xf32>
    %48 = arith.divf %46, %47 : vector<8x192xf32>
    %49 = vector.extract_strided_slice %42 {offsets = [0, 192], sizes = [8, 64], strides = [1, 1]} : vector<8x256xf32> to vector<8x64xf32>
    %50 = math.tanh %49 : vector<8x64xf32>
    %51 = vector.extract_strided_slice %48 {offsets = [0, 0], sizes = [8, 64], strides = [1, 1]} : vector<8x192xf32> to vector<8x64xf32>
    %52 = vector.extract_strided_slice %48 {offsets = [0, 64], sizes = [8, 64], strides = [1, 1]} : vector<8x192xf32> to vector<8x64xf32>
    %53 = vector.extract_strided_slice %48 {offsets = [0, 128], sizes = [8, 64], strides = [1, 1]} : vector<8x192xf32> to vector<8x64xf32>
    %54 = arith.mulf %52, %30 : vector<8x64xf32>
    %55 = arith.mulf %51, %50 : vector<8x64xf32>
    %56 = arith.addf %54, %55 : vector<8x64xf32>
    %57 = math.tanh %56 : vector<8x64xf32>
    %58 = arith.mulf %53, %57 : vector<8x64xf32>
    %59 = arith.index_cast %c1_i32 : i32 to index
    %c0_25 = arith.constant 0 : index
    %c0_26 = arith.constant 0 : index
    %60 = vector.load %arg8[%59, %c0_25, %c0_26] : memref<8x8x64xf32, #tpu.memory_space<vmem>>, vector<1x8x64xf32>
    %61 = vector.shape_cast %60 : vector<1x8x64xf32> to vector<8x64xf32>
    %62 = vector.shape_cast %58 : vector<8x64xf32> to vector<1x8x64xf32>
    tpu.vector_store %arg8[%59, %c0_25, %c0_26], %62 {strides = array<i32>} : memref<8x8x64xf32, #tpu.memory_space<vmem>>, vector<1x8x64xf32>,
    %c2_i32 = arith.constant 2 : i32
    %63 = arith.index_cast %c2_i32 : i32 to index
    %c0_27 = arith.constant 0 : index
    %c0_28 = arith.constant 0 : index
    %64 = vector.load %arg7[%63, %c0_27, %c0_28] : memref<8x8x256xf32, #tpu.memory_space<vmem>>, vector<1x8x256xf32>
    %65 = vector.shape_cast %64 : vector<1x8x256xf32> to vector<8x256xf32>
    %c0_29 = arith.constant 0 : index
    %c0_30 = arith.constant 0 : index
    %66 = vector.load %arg2[%c0_29, %c0_30] : memref<64x256xf32, #tpu.memory_space<vmem>>, vector<64x256xf32>
    %cst_31 = arith.constant dense<0.000000e+00> : vector<8x256xf32>
    %67 = tpu.matmul %58, %66, %cst_31 {dimension_numbers = #tpu.dot_dimension_numbers<[1], [0], [0], [1], [0, 0, 1, 1], [], []>} : vector<8x64xf32>, vector<64x256xf32>, vector<8x256xf32> -> vector<8x256xf32>
    %68 = arith.addf %65, %67 : vector<8x256xf32>
    %69 = vector.extract_strided_slice %68 {offsets = [0, 0], sizes = [8, 192], strides = [1, 1]} : vector<8x256xf32> to vector<8x192xf32>
    %70 = arith.negf %69 : vector<8x192xf32>
    %71 = math.exp %70 : vector<8x192xf32>
    %cst_32 = arith.constant 1.000000e+00 : f32
    %72 = vector.broadcast %cst_32 : f32 to vector<8x192xf32>
    %73 = arith.addf %72, %71 : vector<8x192xf32>
    %74 = arith.divf %72, %73 : vector<8x192xf32>
    %75 = vector.extract_strided_slice %68 {offsets = [0, 192], sizes = [8, 64], strides = [1, 1]} : vector<8x256xf32> to vector<8x64xf32>
    %76 = math.tanh %75 : vector<8x64xf32>
    %77 = vector.extract_strided_slice %74 {offsets = [0, 0], sizes = [8, 64], strides = [1, 1]} : vector<8x192xf32> to vector<8x64xf32>
    %78 = vector.extract_strided_slice %74 {offsets = [0, 64], sizes = [8, 64], strides = [1, 1]} : vector<8x192xf32> to vector<8x64xf32>
    %79 = vector.extract_strided_slice %74 {offsets = [0, 128], sizes = [8, 64], strides = [1, 1]} : vector<8x192xf32> to vector<8x64xf32>
    %80 = arith.mulf %78, %56 : vector<8x64xf32>
    %81 = arith.mulf %77, %76 : vector<8x64xf32>
    %82 = arith.addf %80, %81 : vector<8x64xf32>
    %83 = math.tanh %82 : vector<8x64xf32>
    %84 = arith.mulf %79, %83 : vector<8x64xf32>
    %85 = arith.index_cast %c2_i32 : i32 to index
    %c0_33 = arith.constant 0 : index
    %c0_34 = arith.constant 0 : index
    %86 = vector.load %arg8[%85, %c0_33, %c0_34] : memref<8x8x64xf32, #tpu.memory_space<vmem>>, vector<1x8x64xf32>
    %87 = vector.shape_cast %86 : vector<1x8x64xf32> to vector<8x64xf32>
    %88 = vector.shape_cast %84 : vector<8x64xf32> to vector<1x8x64xf32>
    tpu.vector_store %arg8[%85, %c0_33, %c0_34], %88 {strides = array<i32>} : memref<8x8x64xf32, #tpu.memory_space<vmem>>, vector<1x8x64xf32>,
    %c3_i32 = arith.constant 3 : i32
    %89 = arith.index_cast %c3_i32 : i32 to index
    %c0_35 = arith.constant 0 : index
    %c0_36 = arith.constant 0 : index
    %90 = vector.load %arg7[%89, %c0_35, %c0_36] : memref<8x8x256xf32, #tpu.memory_space<vmem>>, vector<1x8x256xf32>
    %91 = vector.shape_cast %90 : vector<1x8x256xf32> to vector<8x256xf32>
    %c0_37 = arith.constant 0 : index
    %c0_38 = arith.constant 0 : index
    %92 = vector.load %arg2[%c0_37, %c0_38] : memref<64x256xf32, #tpu.memory_space<vmem>>, vector<64x256xf32>
    %cst_39 = arith.constant dense<0.000000e+00> : vector<8x256xf32>
    %93 = tpu.matmul %84, %92, %cst_39 {dimension_numbers = #tpu.dot_dimension_numbers<[1], [0], [0], [1], [0, 0, 1, 1], [], []>} : vector<8x64xf32>, vector<64x256xf32>, vector<8x256xf32> -> vector<8x256xf32>
    %94 = arith.addf %91, %93 : vector<8x256xf32>
    %95 = vector.extract_strided_slice %94 {offsets = [0, 0], sizes = [8, 192], strides = [1, 1]} : vector<8x256xf32> to vector<8x192xf32>
    %96 = arith.negf %95 : vector<8x192xf32>
    %97 = math.exp %96 : vector<8x192xf32>
    %cst_40 = arith.constant 1.000000e+00 : f32
    %98 = vector.broadcast %cst_40 : f32 to vector<8x192xf32>
    %99 = arith.addf %98, %97 : vector<8x192xf32>
    %100 = arith.divf %98, %99 : vector<8x192xf32>
    %101 = vector.extract_strided_slice %94 {offsets = [0, 192], sizes = [8, 64], strides = [1, 1]} : vector<8x256xf32> to vector<8x64xf32>
    %102 = math.tanh %101 : vector<8x64xf32>
    %103 = vector.extract_strided_slice %100 {offsets = [0, 0], sizes = [8, 64], strides = [1, 1]} : vector<8x192xf32> to vector<8x64xf32>
    %104 = vector.extract_strided_slice %100 {offsets = [0, 64], sizes = [8, 64], strides = [1, 1]} : vector<8x192xf32> to vector<8x64xf32>
    %105 = vector.extract_strided_slice %100 {offsets = [0, 128], sizes = [8, 64], strides = [1, 1]} : vector<8x192xf32> to vector<8x64xf32>
    %106 = arith.mulf %104, %82 : vector<8x64xf32>
    %107 = arith.mulf %103, %102 : vector<8x64xf32>
    %108 = arith.addf %106, %107 : vector<8x64xf32>
    %109 = math.tanh %108 : vector<8x64xf32>
    %110 = arith.mulf %105, %109 : vector<8x64xf32>
    %111 = arith.index_cast %c3_i32 : i32 to index
    %c0_41 = arith.constant 0 : index
    %c0_42 = arith.constant 0 : index
    %112 = vector.load %arg8[%111, %c0_41, %c0_42] : memref<8x8x64xf32, #tpu.memory_space<vmem>>, vector<1x8x64xf32>
    %113 = vector.shape_cast %112 : vector<1x8x64xf32> to vector<8x64xf32>
    %114 = vector.shape_cast %110 : vector<8x64xf32> to vector<1x8x64xf32>
    tpu.vector_store %arg8[%111, %c0_41, %c0_42], %114 {strides = array<i32>} : memref<8x8x64xf32, #tpu.memory_space<vmem>>, vector<1x8x64xf32>,
    %c4_i32 = arith.constant 4 : i32
    %115 = arith.index_cast %c4_i32 : i32 to index
    %c0_43 = arith.constant 0 : index
    %c0_44 = arith.constant 0 : index
    %116 = vector.load %arg7[%115, %c0_43, %c0_44] : memref<8x8x256xf32, #tpu.memory_space<vmem>>, vector<1x8x256xf32>
    %117 = vector.shape_cast %116 : vector<1x8x256xf32> to vector<8x256xf32>
    %c0_45 = arith.constant 0 : index
    %c0_46 = arith.constant 0 : index
    %118 = vector.load %arg2[%c0_45, %c0_46] : memref<64x256xf32, #tpu.memory_space<vmem>>, vector<64x256xf32>
    %cst_47 = arith.constant dense<0.000000e+00> : vector<8x256xf32>
    %119 = tpu.matmul %110, %118, %cst_47 {dimension_numbers = #tpu.dot_dimension_numbers<[1], [0], [0], [1], [0, 0, 1, 1], [], []>} : vector<8x64xf32>, vector<64x256xf32>, vector<8x256xf32> -> vector<8x256xf32>
    %120 = arith.addf %117, %119 : vector<8x256xf32>
    %121 = vector.extract_strided_slice %120 {offsets = [0, 0], sizes = [8, 192], strides = [1, 1]} : vector<8x256xf32> to vector<8x192xf32>
    %122 = arith.negf %121 : vector<8x192xf32>
    %123 = math.exp %122 : vector<8x192xf32>
    %cst_48 = arith.constant 1.000000e+00 : f32
    %124 = vector.broadcast %cst_48 : f32 to vector<8x192xf32>
    %125 = arith.addf %124, %123 : vector<8x192xf32>
    %126 = arith.divf %124, %125 : vector<8x192xf32>
    %127 = vector.extract_strided_slice %120 {offsets = [0, 192], sizes = [8, 64], strides = [1, 1]} : vector<8x256xf32> to vector<8x64xf32>
    %128 = math.tanh %127 : vector<8x64xf32>
    %129 = vector.extract_strided_slice %126 {offsets = [0, 0], sizes = [8, 64], strides = [1, 1]} : vector<8x192xf32> to vector<8x64xf32>
    %130 = vector.extract_strided_slice %126 {offsets = [0, 64], sizes = [8, 64], strides = [1, 1]} : vector<8x192xf32> to vector<8x64xf32>
    %131 = vector.extract_strided_slice %126 {offsets = [0, 128], sizes = [8, 64], strides = [1, 1]} : vector<8x192xf32> to vector<8x64xf32>
    %132 = arith.mulf %130, %108 : vector<8x64xf32>
    %133 = arith.mulf %129, %128 : vector<8x64xf32>
    %134 = arith.addf %132, %133 : vector<8x64xf32>
    %135 = math.tanh %134 : vector<8x64xf32>
    %136 = arith.mulf %131, %135 : vector<8x64xf32>
    %137 = arith.index_cast %c4_i32 : i32 to index
    %c0_49 = arith.constant 0 : index
    %c0_50 = arith.constant 0 : index
    %138 = vector.load %arg8[%137, %c0_49, %c0_50] : memref<8x8x64xf32, #tpu.memory_space<vmem>>, vector<1x8x64xf32>
    %139 = vector.shape_cast %138 : vector<1x8x64xf32> to vector<8x64xf32>
    %140 = vector.shape_cast %136 : vector<8x64xf32> to vector<1x8x64xf32>
    tpu.vector_store %arg8[%137, %c0_49, %c0_50], %140 {strides = array<i32>} : memref<8x8x64xf32, #tpu.memory_space<vmem>>, vector<1x8x64xf32>,
    %c5_i32 = arith.constant 5 : i32
    %141 = arith.index_cast %c5_i32 : i32 to index
    %c0_51 = arith.constant 0 : index
    %c0_52 = arith.constant 0 : index
    %142 = vector.load %arg7[%141, %c0_51, %c0_52] : memref<8x8x256xf32, #tpu.memory_space<vmem>>, vector<1x8x256xf32>
    %143 = vector.shape_cast %142 : vector<1x8x256xf32> to vector<8x256xf32>
    %c0_53 = arith.constant 0 : index
    %c0_54 = arith.constant 0 : index
    %144 = vector.load %arg2[%c0_53, %c0_54] : memref<64x256xf32, #tpu.memory_space<vmem>>, vector<64x256xf32>
    %cst_55 = arith.constant dense<0.000000e+00> : vector<8x256xf32>
    %145 = tpu.matmul %136, %144, %cst_55 {dimension_numbers = #tpu.dot_dimension_numbers<[1], [0], [0], [1], [0, 0, 1, 1], [], []>} : vector<8x64xf32>, vector<64x256xf32>, vector<8x256xf32> -> vector<8x256xf32>
    %146 = arith.addf %143, %145 : vector<8x256xf32>
    %147 = vector.extract_strided_slice %146 {offsets = [0, 0], sizes = [8, 192], strides = [1, 1]} : vector<8x256xf32> to vector<8x192xf32>
    %148 = arith.negf %147 : vector<8x192xf32>
    %149 = math.exp %148 : vector<8x192xf32>
    %cst_56 = arith.constant 1.000000e+00 : f32
    %150 = vector.broadcast %cst_56 : f32 to vector<8x192xf32>
    %151 = arith.addf %150, %149 : vector<8x192xf32>
    %152 = arith.divf %150, %151 : vector<8x192xf32>
    %153 = vector.extract_strided_slice %146 {offsets = [0, 192], sizes = [8, 64], strides = [1, 1]} : vector<8x256xf32> to vector<8x64xf32>
    %154 = math.tanh %153 : vector<8x64xf32>
    %155 = vector.extract_strided_slice %152 {offsets = [0, 0], sizes = [8, 64], strides = [1, 1]} : vector<8x192xf32> to vector<8x64xf32>
    %156 = vector.extract_strided_slice %152 {offsets = [0, 64], sizes = [8, 64], strides = [1, 1]} : vector<8x192xf32> to vector<8x64xf32>
    %157 = vector.extract_strided_slice %152 {offsets = [0, 128], sizes = [8, 64], strides = [1, 1]} : vector<8x192xf32> to vector<8x64xf32>
    %158 = arith.mulf %156, %134 : vector<8x64xf32>
    %159 = arith.mulf %155, %154 : vector<8x64xf32>
    %160 = arith.addf %158, %159 : vector<8x64xf32>
    %161 = math.tanh %160 : vector<8x64xf32>
    %162 = arith.mulf %157, %161 : vector<8x64xf32>
    %163 = arith.index_cast %c5_i32 : i32 to index
    %c0_57 = arith.constant 0 : index
    %c0_58 = arith.constant 0 : index
    %164 = vector.load %arg8[%163, %c0_57, %c0_58] : memref<8x8x64xf32, #tpu.memory_space<vmem>>, vector<1x8x64xf32>
    %165 = vector.shape_cast %164 : vector<1x8x64xf32> to vector<8x64xf32>
    %166 = vector.shape_cast %162 : vector<8x64xf32> to vector<1x8x64xf32>
    tpu.vector_store %arg8[%163, %c0_57, %c0_58], %166 {strides = array<i32>} : memref<8x8x64xf32, #tpu.memory_space<vmem>>, vector<1x8x64xf32>,
    %c6_i32 = arith.constant 6 : i32
    %167 = arith.index_cast %c6_i32 : i32 to index
    %c0_59 = arith.constant 0 : index
    %c0_60 = arith.constant 0 : index
    %168 = vector.load %arg7[%167, %c0_59, %c0_60] : memref<8x8x256xf32, #tpu.memory_space<vmem>>, vector<1x8x256xf32>
    %169 = vector.shape_cast %168 : vector<1x8x256xf32> to vector<8x256xf32>
    %c0_61 = arith.constant 0 : index
    %c0_62 = arith.constant 0 : index
    %170 = vector.load %arg2[%c0_61, %c0_62] : memref<64x256xf32, #tpu.memory_space<vmem>>, vector<64x256xf32>
    %cst_63 = arith.constant dense<0.000000e+00> : vector<8x256xf32>
    %171 = tpu.matmul %162, %170, %cst_63 {dimension_numbers = #tpu.dot_dimension_numbers<[1], [0], [0], [1], [0, 0, 1, 1], [], []>} : vector<8x64xf32>, vector<64x256xf32>, vector<8x256xf32> -> vector<8x256xf32>
    %172 = arith.addf %169, %171 : vector<8x256xf32>
    %173 = vector.extract_strided_slice %172 {offsets = [0, 0], sizes = [8, 192], strides = [1, 1]} : vector<8x256xf32> to vector<8x192xf32>
    %174 = arith.negf %173 : vector<8x192xf32>
    %175 = math.exp %174 : vector<8x192xf32>
    %cst_64 = arith.constant 1.000000e+00 : f32
    %176 = vector.broadcast %cst_64 : f32 to vector<8x192xf32>
    %177 = arith.addf %176, %175 : vector<8x192xf32>
    %178 = arith.divf %176, %177 : vector<8x192xf32>
    %179 = vector.extract_strided_slice %172 {offsets = [0, 192], sizes = [8, 64], strides = [1, 1]} : vector<8x256xf32> to vector<8x64xf32>
    %180 = math.tanh %179 : vector<8x64xf32>
    %181 = vector.extract_strided_slice %178 {offsets = [0, 0], sizes = [8, 64], strides = [1, 1]} : vector<8x192xf32> to vector<8x64xf32>
    %182 = vector.extract_strided_slice %178 {offsets = [0, 64], sizes = [8, 64], strides = [1, 1]} : vector<8x192xf32> to vector<8x64xf32>
    %183 = vector.extract_strided_slice %178 {offsets = [0, 128], sizes = [8, 64], strides = [1, 1]} : vector<8x192xf32> to vector<8x64xf32>
    %184 = arith.mulf %182, %160 : vector<8x64xf32>
    %185 = arith.mulf %181, %180 : vector<8x64xf32>
    %186 = arith.addf %184, %185 : vector<8x64xf32>
    %187 = math.tanh %186 : vector<8x64xf32>
    %188 = arith.mulf %183, %187 : vector<8x64xf32>
    %189 = arith.index_cast %c6_i32 : i32 to index
    %c0_65 = arith.constant 0 : index
    %c0_66 = arith.constant 0 : index
    %190 = vector.load %arg8[%189, %c0_65, %c0_66] : memref<8x8x64xf32, #tpu.memory_space<vmem>>, vector<1x8x64xf32>
    %191 = vector.shape_cast %190 : vector<1x8x64xf32> to vector<8x64xf32>
    %192 = vector.shape_cast %188 : vector<8x64xf32> to vector<1x8x64xf32>
    tpu.vector_store %arg8[%189, %c0_65, %c0_66], %192 {strides = array<i32>} : memref<8x8x64xf32, #tpu.memory_space<vmem>>, vector<1x8x64xf32>,
    %c7_i32 = arith.constant 7 : i32
    %193 = arith.index_cast %c7_i32 : i32 to index
    %c0_67 = arith.constant 0 : index
    %c0_68 = arith.constant 0 : index
    %194 = vector.load %arg7[%193, %c0_67, %c0_68] : memref<8x8x256xf32, #tpu.memory_space<vmem>>, vector<1x8x256xf32>
    %195 = vector.shape_cast %194 : vector<1x8x256xf32> to vector<8x256xf32>
    %c0_69 = arith.constant 0 : index
    %c0_70 = arith.constant 0 : index
    %196 = vector.load %arg2[%c0_69, %c0_70] : memref<64x256xf32, #tpu.memory_space<vmem>>, vector<64x256xf32>
    %cst_71 = arith.constant dense<0.000000e+00> : vector<8x256xf32>
    %197 = tpu.matmul %188, %196, %cst_71 {dimension_numbers = #tpu.dot_dimension_numbers<[1], [0], [0], [1], [0, 0, 1, 1], [], []>} : vector<8x64xf32>, vector<64x256xf32>, vector<8x256xf32> -> vector<8x256xf32>
    %198 = arith.addf %195, %197 : vector<8x256xf32>
    %199 = vector.extract_strided_slice %198 {offsets = [0, 0], sizes = [8, 192], strides = [1, 1]} : vector<8x256xf32> to vector<8x192xf32>
    %200 = arith.negf %199 : vector<8x192xf32>
    %201 = math.exp %200 : vector<8x192xf32>
    %cst_72 = arith.constant 1.000000e+00 : f32
    %202 = vector.broadcast %cst_72 : f32 to vector<8x192xf32>
    %203 = arith.addf %202, %201 : vector<8x192xf32>
    %204 = arith.divf %202, %203 : vector<8x192xf32>
    %205 = vector.extract_strided_slice %198 {offsets = [0, 192], sizes = [8, 64], strides = [1, 1]} : vector<8x256xf32> to vector<8x64xf32>
    %206 = math.tanh %205 : vector<8x64xf32>
    %207 = vector.extract_strided_slice %204 {offsets = [0, 0], sizes = [8, 64], strides = [1, 1]} : vector<8x192xf32> to vector<8x64xf32>
    %208 = vector.extract_strided_slice %204 {offsets = [0, 64], sizes = [8, 64], strides = [1, 1]} : vector<8x192xf32> to vector<8x64xf32>
    %209 = vector.extract_strided_slice %204 {offsets = [0, 128], sizes = [8, 64], strides = [1, 1]} : vector<8x192xf32> to vector<8x64xf32>
    %210 = arith.mulf %208, %186 : vector<8x64xf32>
    %211 = arith.mulf %207, %206 : vector<8x64xf32>
    %212 = arith.addf %210, %211 : vector<8x64xf32>
    %213 = math.tanh %212 : vector<8x64xf32>
    %214 = arith.mulf %209, %213 : vector<8x64xf32>
    %215 = arith.index_cast %c7_i32 : i32 to index
    %c0_73 = arith.constant 0 : index
    %c0_74 = arith.constant 0 : index
    %216 = vector.load %arg8[%215, %c0_73, %c0_74] : memref<8x8x64xf32, #tpu.memory_space<vmem>>, vector<1x8x64xf32>
    %217 = vector.shape_cast %216 : vector<1x8x64xf32> to vector<8x64xf32>
    %218 = vector.shape_cast %214 : vector<8x64xf32> to vector<1x8x64xf32>
    tpu.vector_store %arg8[%215, %c0_73, %c0_74], %218 {strides = array<i32>} : memref<8x8x64xf32, #tpu.memory_space<vmem>>, vector<1x8x64xf32>,
    %c8_i32 = arith.constant 8 : i32
    %c0_75 = arith.constant 0 : index
    %c0_76 = arith.constant 0 : index
    %c0_77 = arith.constant 0 : index
    %219 = vector.load %arg8[%c0_75, %c0_76, %c0_77] : memref<8x8x64xf32, #tpu.memory_space<vmem>>, vector<8x8x64xf32>
    %220 = vector.shape_cast %219 : vector<8x8x64xf32> to vector<64x64xf32>
    %c0_78 = arith.constant 0 : index
    %c0_79 = arith.constant 0 : index
    %221 = vector.load %arg4[%c0_78, %c0_79] : memref<64x4xf32, #tpu.memory_space<vmem>>, vector<64x4xf32>
    %cst_80 = arith.constant dense<0.000000e+00> : vector<64x4xf32>
    %222 = tpu.matmul %220, %221, %cst_80 {dimension_numbers = #tpu.dot_dimension_numbers<[1], [0], [0], [1], [0, 0, 1, 1], [], []>} : vector<64x64xf32>, vector<64x4xf32>, vector<64x4xf32> -> vector<64x4xf32>
    %c0_81 = arith.constant 0 : index
    %c0_82 = arith.constant 0 : index
    %223 = vector.load %arg5[%c0_81, %c0_82] : memref<1x4xf32, #tpu.memory_space<vmem>>, vector<1x4xf32>
    %224 = vector.broadcast %223 : vector<1x4xf32> to vector<64x4xf32>
    %225 = arith.addf %222, %224 : vector<64x4xf32>
    %226 = vector.shape_cast %225 : vector<64x4xf32> to vector<8x8x4xf32>
    %c0_83 = arith.constant 0 : index
    %c0_84 = arith.constant 0 : index
    %c0_85 = arith.constant 0 : index
    %227 = vector.load %arg6[%c0_83, %c0_84, %c0_85] : memref<8x8x4xf32, #tpu.memory_space<vmem>>, vector<8x8x4xf32>
    tpu.vector_store %arg6[%c0_83, %c0_84, %c0_85], %226 {strides = array<i32>} : memref<8x8x4xf32, #tpu.memory_space<vmem>>, vector<8x8x4xf32>,
    return
  }
}

</mosaic_0001>

<llo_original>
// kernel: tpu_custom_call.1
$region0: #{tpu_custom_call.1}
  #allocation0 [shape = 'u32[]', space=smem, size = 0x4, offset = 0x4, fixed_abs, tag = 'smem constant byte address 0x4 - core index']
  #allocation1 [shape = 'u32[144,128]{1,0:T(1,128)}', space=vmem, size = 0x12000, scoped, tag = 'internal scratch']
  #allocation2 [shape = 'f32[8,8,256]{2,1,0:T(8,128)}', space=vmem, size = 0x10000, scoped, tag = 'scratch operand']
  #allocation3 [shape = 'f32[8,8,64]{2,1,0:T(8,128)}', space=vmem, size = 0x8000, scoped, tag = 'scratch operand']
  %s0 = inlined_call_operand.vmem [shape: f32[8,8,4], index: 0, kind: input, shape index: {}]
  %s1 = inlined_call_operand.vmem [shape: f32[4,256], index: 1, kind: input, shape index: {}]
  %s2 = inlined_call_operand.vmem [shape: f32[64,256], index: 2, kind: input, shape index: {}]
  %s3 = inlined_call_operand.vmem [shape: f32[1,256], index: 3, kind: input, shape index: {}]
  %s4 = inlined_call_operand.vmem [shape: f32[64,4], index: 4, kind: input, shape index: {}]
  %s5 = inlined_call_operand.vmem [shape: f32[1,4], index: 5, kind: input, shape index: {}]
  %s6 = inlined_call_operand.vmem [shape: f32[8,8,4], index: 6, kind: output, shape index: {}]
  %s7 = sld [smem:[#allocation0]]
  $region34: #{tpu_custom_call.1} parent=0
    _
  %s9 = ssub.s32 1, %s7
  %s10 = scalar_select 0, %s9, %s7
  // Predicated region
  $region2: #{tpu_custom_call.1} parent=0 // pred_check
    _
  $region3: #{tpu_custom_call.1} parent=0 // pred_check_branch
    %12 = sbr.rel (0) target = $region5
  $region4: #{tpu_custom_call.1} parent=0 // pred_region
    _
  $region5: #{tpu_custom_call.1} parent=0 // pred_fallthru
    _
  // Predicated region
  $region6: #{tpu_custom_call.1} parent=0 // pred_check
    _
  $region7: #{tpu_custom_call.1} parent=0 // pred_check_branch
    %14 = sbr.rel (0) target = $region9
  $region8: #{tpu_custom_call.1} parent=0 // pred_region
    _
  $region9: #{tpu_custom_call.1} parent=0 // pred_fallthru
    _
  // Predicated region
  $region10: #{tpu_custom_call.1} parent=0 // pred_check
    _
  $region11: #{tpu_custom_call.1} parent=0 // pred_check_branch
    %16 = sbr.rel (0) target = $region13
  $region12: #{tpu_custom_call.1} parent=0 // pred_region
    _
  $region13: #{tpu_custom_call.1} parent=0 // pred_fallthru
    _
  // Predicated region
  $region14: #{tpu_custom_call.1} parent=0 // pred_check
    _
  $region15: #{tpu_custom_call.1} parent=0 // pred_check_branch
    %18 = sbr.rel (0) target = $region17
  $region16: #{tpu_custom_call.1} parent=0 // pred_region
    _
  $region17: #{tpu_custom_call.1} parent=0 // pred_fallthru
    _
  // Predicated region
  $region18: #{tpu_custom_call.1} parent=0 // pred_check
    _
  $region19: #{tpu_custom_call.1} parent=0 // pred_check_branch
    %20 = sbr.rel (0) target = $region21
  $region20: #{tpu_custom_call.1} parent=0 // pred_region
    _
  $region21: #{tpu_custom_call.1} parent=0 // pred_fallthru
    _
  // Predicated region
  $region22: #{tpu_custom_call.1} parent=0 // pred_check
    _
  $region23: #{tpu_custom_call.1} parent=0 // pred_check_branch
    %22 = sbr.rel (0) target = $region25
  $region24: #{tpu_custom_call.1} parent=0 // pred_region
    _
  $region25: #{tpu_custom_call.1} parent=0 // pred_fallthru
    _
  %v23 = vld [vmem:[%s0] sm:$0xff]
  %v24 = vld [vmem:[%s0 + $0x8] sm:$0xff]
  %v25 = vld [vmem:[%s0 + $0x10] sm:$0xff]
  %v26 = vld [vmem:[%s0 + $0x18] sm:$0xff]
  %v27 = vld [vmem:[%s0 + $0x20] sm:$0xff]
  %v28 = vld [vmem:[%s0 + $0x28] sm:$0xff]
  %v29 = vld [vmem:[%s0 + $0x30] sm:$0xff]
  %v30 = vld [vmem:[%s0 + $0x38] sm:$0xff]
  %v31 = vld [vmem:[%s1] sm:$0xff]
  %v32 = vld [vmem:[%s3] sm:$0x3]
  %v34 = vlaneseq
  %v35 = vshrl.u32 %v34, 7
  %v36 = vsub.s32 0, %v35
  %v37 = vrot.slane %v32, %v36
  %v38 = vlaneseq
  %v39 = vshrl.u32 %v38, 7
  %v40 = vsub.s32 1, %v39
  %v41 = vrot.slane %v32, %v40
  %v45 = vcombine.high %v31, %v31
  %vm46 = vcmask 31744
  %v48 = vsel %vm46, %v23, 0
  %v51 = vsel %vm46, %v24, 0
  %v54 = vsel %vm46, %v25, 0
  %v57 = vsel %vm46, %v26, 0
  %v60 = vsel %vm46, %v27, 0
  %v63 = vsel %vm46, %v28, 0
  %v66 = vsel %vm46, %v29, 0
  %v69 = vsel %vm46, %v30, 0
  %vm71 = vcmask 1043456
  %v72 = vsel %vm71, %v31, 0
  %v74 = vsel %vm71, %v45, 0
  %76 = vmatprep.subr.mxu0 0.0
  %77 = vmatpush1.msra.mxu0 0.0
  %78 = vmatprep.subr.mxu0 0.0
  %79 = vmatpush1.msra.mxu0 0.0
  %80 = vmatprep.subr.mxu0 0.0
  %81 = vmatpush1.msra.mxu0 0.0
  %82 = vmatprep.subr.mxu0 0.0
  %83 = vmatpush1.msra.mxu0 0.0
  %84 = vmatprep.subr.mxu0 0.0
  %85 = vmatpush1.msra.mxu0 0.0
  %86 = vmatprep.subr.mxu0 0.0
  %87 = vmatpush1.msra.mxu0 0.0
  %88 = vmatprep.subr.mxu0 0.0
  %89 = vmatpush1.msra.mxu0 0.0
  %90 = vmatprep.subr.mxu0 0.0
  %91 = vmatpush1.msra.mxu0 0.0
  %92 = vmatprep.subr.mxu0 0.0
  %93 = vmatpush1.msra.mxu0 0.0
  %94 = vmatprep.subr.mxu0 0.0
  %95 = vmatpush1.msra.mxu0 0.0
  %96 = vmatprep.subr.mxu0 0.0
  %97 = vmatpush1.msra.mxu0 0.0
  %98 = vmatprep.subr.mxu0 0.0
  %99 = vmatpush1.msra.mxu0 0.0
  %100 = vmatprep.subr.mxu0 0.0
  %101 = vmatpush1.msra.mxu0 0.0
  %102 = vmatprep.subr.mxu0 0.0
  %103 = vmatpush1.msra.mxu0 0.0
  %104 = vmatprep.subr.mxu0 0.0
  %105 = vmatpush1.msra.mxu0 0.0
  %106 = vmatprep.subr.mxu0 %v74
  %107 = vmatpush1.msra.mxu0 %v72
  %108 = vmatprep.subr.mxu0 0.0
  %109 = vmatpush2.msra.mxu0 0.0
  %110 = vmatprep.subr.mxu0 0.0
  %111 = vmatpush2.msra.mxu0 0.0
  %112 = vmatprep.subr.mxu0 0.0
  %113 = vmatpush2.msra.mxu0 0.0
  %114 = vmatprep.subr.mxu0 0.0
  %115 = vmatpush2.msra.mxu0 0.0
  %116 = vmatprep.subr.mxu0 0.0
  %117 = vmatpush2.msra.mxu0 0.0
  %118 = vmatprep.subr.mxu0 0.0
  %119 = vmatpush2.msra.mxu0 0.0
  %120 = vmatprep.subr.mxu0 0.0
  %121 = vmatpush2.msra.mxu0 0.0
  %122 = vmatprep.subr.mxu0 0.0
  %123 = vmatpush2.msra.mxu0 0.0
  %124 = vmatprep.subr.mxu0 0.0
  %125 = vmatpush2.msra.mxu0 0.0
  %126 = vmatprep.subr.mxu0 0.0
  %127 = vmatpush2.msra.mxu0 0.0
  %128 = vmatprep.subr.mxu0 0.0
  %129 = vmatpush2.msra.mxu0 0.0
  %130 = vmatprep.subr.mxu0 0.0
  %131 = vmatpush2.msra.mxu0 0.0
  %132 = vmatprep.subr.mxu0 0.0
  %133 = vmatpush2.msra.mxu0 0.0
  %134 = vmatprep.subr.mxu0 0.0
  %135 = vmatpush2.msra.mxu0 0.0
  %136 = vmatprep.subr.mxu0 0.0
  %137 = vmatpush2.msra.mxu0 0.0
  %138 = vmatprep.subr.mxu0 0.0
  %139 = vmatpush2.msra.mxu0 0.0
  %140 = vmatprep.mubr.f32.mxu0 0.0
  %141 = vmatmul.mubr.f32.gmra.mxu0 %v48
  %v142 = vpop.f32.mrf.mxu0
  %v143 = vadd.f32 %v37, %v142
  %v144 = vpop.f32.mrf.mxu0
  %v145 = vadd.f32 %v41, %v144
  %146 = vmatprep.mubr.f32.mxu0 0.0
  %147 = vmatmul.mubr.f32.gmra.mxu0 %v51
  %v148 = vpop.f32.mrf.mxu0
  %v149 = vadd.f32 %v37, %v148
  %v150 = vpop.f32.mrf.mxu0
  %v151 = vadd.f32 %v41, %v150
  %152 = vmatprep.mubr.f32.mxu0 0.0
  %153 = vmatmul.mubr.f32.gmra.mxu0 %v54
  %v154 = vpop.f32.mrf.mxu0
  %v155 = vadd.f32 %v37, %v154
  %v156 = vpop.f32.mrf.mxu0
  %v157 = vadd.f32 %v41, %v156
  %158 = vmatprep.mubr.f32.mxu0 0.0
  %159 = vmatmul.mubr.f32.gmra.mxu0 %v57
  %v160 = vpop.f32.mrf.mxu0
  %v161 = vadd.f32 %v37, %v160
  %v162 = vpop.f32.mrf.mxu0
  %v163 = vadd.f32 %v41, %v162
  %164 = vmatprep.mubr.f32.mxu0 0.0
  %165 = vmatmul.mubr.f32.gmra.mxu0 %v60
  %v166 = vpop.f32.mrf.mxu0
  %v167 = vadd.f32 %v37, %v166
  %v168 = vpop.f32.mrf.mxu0
  %v169 = vadd.f32 %v41, %v168
  %170 = vmatprep.mubr.f32.mxu0 0.0
  %171 = vmatmul.mubr.f32.gmra.mxu0 %v63
  %v172 = vpop.f32.mrf.mxu0
  %v173 = vadd.f32 %v37, %v172
  %v174 = vpop.f32.mrf.mxu0
  %v175 = vadd.f32 %v41, %v174
  %176 = vmatprep.mubr.f32.mxu0 0.0
  %177 = vmatmul.mubr.f32.gmra.mxu0 %v66
  %v178 = vpop.f32.mrf.mxu0
  %v179 = vadd.f32 %v37, %v178
  %v180 = vpop.f32.mrf.mxu0
  %v181 = vadd.f32 %v41, %v180
  %182 = vmatprep.mubr.f32.mxu0 0.0
  %183 = vmatmul.mubr.f32.gmra.mxu0 %v69
  %v184 = vpop.f32.mrf.mxu0
  %v185 = vadd.f32 %v37, %v184
  %v186 = vpop.f32.mrf.mxu0
  %v187 = vadd.f32 %v41, %v186
  %188 = vdwg.mxu0
  %189 = vst [vmem:[#allocation2] sm:$0xff] %v143
  %190 = vst [vmem:[#allocation2 + $0x8] sm:$0xff] %v145
  %191 = vst [vmem:[#allocation2 + $0x10] sm:$0xff] %v149
  %192 = vst [vmem:[#allocation2 + $0x18] sm:$0xff] %v151
  %193 = vst [vmem:[#allocation2 + $0x20] sm:$0xff] %v155
  %194 = vst [vmem:[#allocation2 + $0x28] sm:$0xff] %v157
  %195 = vst [vmem:[#allocation2 + $0x30] sm:$0xff] %v161
  %196 = vst [vmem:[#allocation2 + $0x38] sm:$0xff] %v163
  %197 = vst [vmem:[#allocation2 + $0x40] sm:$0xff] %v167
  %198 = vst [vmem:[#allocation2 + $0x48] sm:$0xff] %v169
  %199 = vst [vmem:[#allocation2 + $0x50] sm:$0xff] %v173
  %200 = vst [vmem:[#allocation2 + $0x58] sm:$0xff] %v175
  %201 = vst [vmem:[#allocation2 + $0x60] sm:$0xff] %v179
  %202 = vst [vmem:[#allocation2 + $0x68] sm:$0xff] %v181
  %203 = vst [vmem:[#allocation2 + $0x70] sm:$0xff] %v185
  %204 = vst [vmem:[#allocation2 + $0x78] sm:$0xff] %v187
  %v205 = vld [vmem:[#allocation2] sm:$0xff]
  %v206 = vld [vmem:[#allocation2 + $0x8] sm:$0xff]
  %v207 = vld [vmem:[%s2] sm:$0xff]
  %v208 = vld [vmem:[%s2 + $0x8] sm:$0xff]
  %v209 = vld [vmem:[%s2 + $0x10] sm:$0xff]
  %v210 = vld [vmem:[%s2 + $0x18] sm:$0xff]
  %v211 = vld [vmem:[%s2 + $0x20] sm:$0xff]
  %v212 = vld [vmem:[%s2 + $0x28] sm:$0xff]
  %v213 = vld [vmem:[%s2 + $0x30] sm:$0xff]
  %v214 = vld [vmem:[%s2 + $0x38] sm:$0xff]
  %v215 = vld [vmem:[%s2 + $0x40] sm:$0xff]
  %v216 = vld [vmem:[%s2 + $0x48] sm:$0xff]
  %v217 = vld [vmem:[%s2 + $0x50] sm:$0xff]
  %v218 = vld [vmem:[%s2 + $0x58] sm:$0xff]
  %v219 = vld [vmem:[%s2 + $0x60] sm:$0xff]
  %v220 = vld [vmem:[%s2 + $0x68] sm:$0xff]
  %v221 = vld [vmem:[%s2 + $0x70] sm:$0xff]
  %v222 = vld [vmem:[%s2 + $0x78] sm:$0xff]
  %vm223 = vcmask 523264
  %v225 = vsel %vm223, 0.0, 0
  %227 = vmatprep.subr.mxu0 0.0
  %228 = vmatpush1.msra.mxu0 0.0
  %229 = vmatprep.subr.mxu0 0.0
  %230 = vmatpush1.msra.mxu0 0.0
  %231 = vmatprep.subr.mxu0 0.0
  %232 = vmatpush1.msra.mxu0 0.0
  %233 = vmatprep.subr.mxu0 0.0
  %234 = vmatpush1.msra.mxu0 0.0
  %235 = vmatprep.subr.mxu0 0.0
  %236 = vmatpush1.msra.mxu0 0.0
  %237 = vmatprep.subr.mxu0 0.0
  %238 = vmatpush1.msra.mxu0 0.0
  %239 = vmatprep.subr.mxu0 0.0
  %240 = vmatpush1.msra.mxu0 0.0
  %241 = vmatprep.subr.mxu0 0.0
  %242 = vmatpush1.msra.mxu0 0.0
  %243 = vmatprep.subr.mxu0 %v222
  %244 = vmatpush1.msra.mxu0 %v221
  %245 = vmatprep.subr.mxu0 %v220
  %246 = vmatpush1.msra.mxu0 %v219
  %247 = vmatprep.subr.mxu0 %v218
  %248 = vmatpush1.msra.mxu0 %v217
  %249 = vmatprep.subr.mxu0 %v216
  %250 = vmatpush1.msra.mxu0 %v215
  %251 = vmatprep.subr.mxu0 %v214
  %252 = vmatpush1.msra.mxu0 %v213
  %253 = vmatprep.subr.mxu0 %v212
  %254 = vmatpush1.msra.mxu0 %v211
  %255 = vmatprep.subr.mxu0 %v210
  %256 = vmatpush1.msra.mxu0 %v209
  %257 = vmatprep.subr.mxu0 %v208
  %258 = vmatpush1.msra.mxu0 %v207
  %259 = vmatprep.subr.mxu0 0.0
  %260 = vmatpush2.msra.mxu0 0.0
  %261 = vmatprep.subr.mxu0 0.0
  %262 = vmatpush2.msra.mxu0 0.0
  %263 = vmatprep.subr.mxu0 0.0
  %264 = vmatpush2.msra.mxu0 0.0
  %265 = vmatprep.subr.mxu0 0.0
  %266 = vmatpush2.msra.mxu0 0.0
  %267 = vmatprep.subr.mxu0 0.0
  %268 = vmatpush2.msra.mxu0 0.0
  %269 = vmatprep.subr.mxu0 0.0
  %270 = vmatpush2.msra.mxu0 0.0
  %271 = vmatprep.subr.mxu0 0.0
  %272 = vmatpush2.msra.mxu0 0.0
  %273 = vmatprep.subr.mxu0 0.0
  %274 = vmatpush2.msra.mxu0 0.0
  %275 = vmatprep.subr.mxu0 0.0
  %276 = vmatpush2.msra.mxu0 0.0
  %277 = vmatprep.subr.mxu0 0.0
  %278 = vmatpush2.msra.mxu0 0.0
  %279 = vmatprep.subr.mxu0 0.0
  %280 = vmatpush2.msra.mxu0 0.0
  %281 = vmatprep.subr.mxu0 0.0
  %282 = vmatpush2.msra.mxu0 0.0
  %283 = vmatprep.subr.mxu0 0.0
  %284 = vmatpush2.msra.mxu0 0.0
  %285 = vmatprep.subr.mxu0 0.0
  %286 = vmatpush2.msra.mxu0 0.0
  %287 = vmatprep.subr.mxu0 0.0
  %288 = vmatpush2.msra.mxu0 0.0
  %289 = vmatprep.subr.mxu0 0.0
  %290 = vmatpush2.msra.mxu0 0.0
  %291 = vmatprep.mubr.f32.mxu0 0.0
  %292 = vmatmul.mubr.f32.gmra.mxu0 %v225
  %v293 = vpop.f32.mrf.mxu0
  %v294 = vadd.f32 0.0, %v293
  %v295 = vpop.f32.mrf.mxu0
  %v296 = vadd.f32 0.0, %v295
  %297 = vdwg.mxu0
  %v298 = vadd.f32 %v205, %v294
  %v299 = vadd.f32 %v206, %v296
  %v300 = vxor.u32 %v298, 2147483648
  %v301 = vxor.u32 %v299, 2147483648
  %v302 = vmul.f32 %v300, 1.442695
  %v303 = vpow.pop %v302
  %v304 = vmul.f32 %v301, 1.442695
  %v305 = vpow.pop %v304
  %v306 = vadd.f32 %v303, 1.0
  %v307 = vadd.f32 %v305, 1.0
  %v308 = vrcp.pop %v306
  %v309 = vmul.f32 1.0, %v308
  %v310 = vrcp.pop %v307
  %v311 = vmul.f32 1.0, %v310
  %v312 = vtanh.pop %v299
  %v313 = vmul.f32 %v309, 0.0
  %315 = vrot.lane.b32.xlu0 %v312, 64
  %v316 = vpop.permute.xlu0 %315
  %v318 = vmul.f32 %v309, %v316
  %320 = vrot.lane.b32.xlu0 %v318, 64
  %v321 = vpop.permute.xlu0 %320
  %v323 = vadd.f32 %v313, %v321
  %v324 = vtanh.pop %v323
  %326 = vrot.lane.b32.xlu0 %v324, 64
  %v327 = vpop.permute.xlu0 %326
  %v329 = vmul.f32 %v311, %v327
  %330 = vst.msk [vmem:[#allocation3] sm:$0xff] %vm223, %v329
  %s331 = scalar_lea.vmem [#allocation2], 16
  %v332 = vld [vmem:[%s331] sm:$0xff]
  %v333 = vld [vmem:[%s331 + $0x8] sm:$0xff]
  %v334 = vld [vmem:[%s2] sm:$0xff]
  %v335 = vld [vmem:[%s2 + $0x8] sm:$0xff]
  %v336 = vld [vmem:[%s2 + $0x10] sm:$0xff]
  %v337 = vld [vmem:[%s2 + $0x18] sm:$0xff]
  %v338 = vld [vmem:[%s2 + $0x20] sm:$0xff]
  %v339 = vld [vmem:[%s2 + $0x28] sm:$0xff]
  %v340 = vld [vmem:[%s2 + $0x30] sm:$0xff]
  %v341 = vld [vmem:[%s2 + $0x38] sm:$0xff]
  %v342 = vld [vmem:[%s2 + $0x40] sm:$0xff]
  %v343 = vld [vmem:[%s2 + $0x48] sm:$0xff]
  %v344 = vld [vmem:[%s2 + $0x50] sm:$0xff]
  %v345 = vld [vmem:[%s2 + $0x58] sm:$0xff]
  %v346 = vld [vmem:[%s2 + $0x60] sm:$0xff]
  %v347 = vld [vmem:[%s2 + $0x68] sm:$0xff]
  %v348 = vld [vmem:[%s2 + $0x70] sm:$0xff]
  %v349 = vld [vmem:[%s2 + $0x78] sm:$0xff]
  %v351 = vsel %vm223, %v329, 0
  %353 = vmatprep.subr.mxu0 0.0
  %354 = vmatpush1.msra.mxu0 0.0
  %355 = vmatprep.subr.mxu0 0.0
  %356 = vmatpush1.msra.mxu0 0.0
  %357 = vmatprep.subr.mxu0 0.0
  %358 = vmatpush1.msra.mxu0 0.0
  %359 = vmatprep.subr.mxu0 0.0
  %360 = vmatpush1.msra.mxu0 0.0
  %361 = vmatprep.subr.mxu0 0.0
  %362 = vmatpush1.msra.mxu0 0.0
  %363 = vmatprep.subr.mxu0 0.0
  %364 = vmatpush1.msra.mxu0 0.0
  %365 = vmatprep.subr.mxu0 0.0
  %366 = vmatpush1.msra.mxu0 0.0
  %367 = vmatprep.subr.mxu0 0.0
  %368 = vmatpush1.msra.mxu0 0.0
  %369 = vmatprep.subr.mxu0 %v349
  %370 = vmatpush1.msra.mxu0 %v348
  %371 = vmatprep.subr.mxu0 %v347
  %372 = vmatpush1.msra.mxu0 %v346
  %373 = vmatprep.subr.mxu0 %v345
  %374 = vmatpush1.msra.mxu0 %v344
  %375 = vmatprep.subr.mxu0 %v343
  %376 = vmatpush1.msra.mxu0 %v342
  %377 = vmatprep.subr.mxu0 %v341
  %378 = vmatpush1.msra.mxu0 %v340
  %379 = vmatprep.subr.mxu0 %v339
  %380 = vmatpush1.msra.mxu0 %v338
  %381 = vmatprep.subr.mxu0 %v337
  %382 = vmatpush1.msra.mxu0 %v336
  %383 = vmatprep.subr.mxu0 %v335
  %384 = vmatpush1.msra.mxu0 %v334
  %385 = vmatprep.subr.mxu0 0.0
  %386 = vmatpush2.msra.mxu0 0.0
  %387 = vmatprep.subr.mxu0 0.0
  %388 = vmatpush2.msra.mxu0 0.0
  %389 = vmatprep.subr.mxu0 0.0
  %390 = vmatpush2.msra.mxu0 0.0
  %391 = vmatprep.subr.mxu0 0.0
  %392 = vmatpush2.msra.mxu0 0.0
  %393 = vmatprep.subr.mxu0 0.0
  %394 = vmatpush2.msra.mxu0 0.0
  %395 = vmatprep.subr.mxu0 0.0
  %396 = vmatpush2.msra.mxu0 0.0
  %397 = vmatprep.subr.mxu0 0.0
  %398 = vmatpush2.msra.mxu0 0.0
  %399 = vmatprep.subr.mxu0 0.0
  %400 = vmatpush2.msra.mxu0 0.0
  %401 = vmatprep.subr.mxu0 0.0
  %402 = vmatpush2.msra.mxu0 0.0
  %403 = vmatprep.subr.mxu0 0.0
  %404 = vmatpush2.msra.mxu0 0.0
  %405 = vmatprep.subr.mxu0 0.0
  %406 = vmatpush2.msra.mxu0 0.0
  %407 = vmatprep.subr.mxu0 0.0
  %408 = vmatpush2.msra.mxu0 0.0
  %409 = vmatprep.subr.mxu0 0.0
  %410 = vmatpush2.msra.mxu0 0.0
  %411 = vmatprep.subr.mxu0 0.0
  %412 = vmatpush2.msra.mxu0 0.0
  %413 = vmatprep.subr.mxu0 0.0
  %414 = vmatpush2.msra.mxu0 0.0
  %415 = vmatprep.subr.mxu0 0.0
  %416 = vmatpush2.msra.mxu0 0.0
  %417 = vmatprep.mubr.f32.mxu0 0.0
  %418 = vmatmul.mubr.f32.gmra.mxu0 %v351
  %v419 = vpop.f32.mrf.mxu0
  %v420 = vadd.f32 0.0, %v419
  %v421 = vpop.f32.mrf.mxu0
  %v422 = vadd.f32 0.0, %v421
  %423 = vdwg.mxu0
  %v424 = vadd.f32 %v332, %v420
  %v425 = vadd.f32 %v333, %v422
  %v426 = vxor.u32 %v424, 2147483648
  %v427 = vxor.u32 %v425, 2147483648
  %v428 = vmul.f32 %v426, 1.442695
  %v429 = vpow.pop %v428
  %v430 = vmul.f32 %v427, 1.442695
  %v431 = vpow.pop %v430
  %v432 = vadd.f32 %v429, 1.0
  %v433 = vadd.f32 %v431, 1.0
  %v434 = vrcp.pop %v432
  %v435 = vmul.f32 1.0, %v434
  %v436 = vrcp.pop %v433
  %v437 = vmul.f32 1.0, %v436
  %v438 = vtanh.pop %v425
  %v439 = vmul.f32 %v435, %v323
  %441 = vrot.lane.b32.xlu0 %v438, 64
  %v442 = vpop.permute.xlu0 %441
  %v444 = vmul.f32 %v435, %v442
  %446 = vrot.lane.b32.xlu0 %v444, 64
  %v447 = vpop.permute.xlu0 %446
  %v449 = vadd.f32 %v439, %v447
  %v450 = vtanh.pop %v449
  %452 = vrot.lane.b32.xlu0 %v450, 64
  %v453 = vpop.permute.xlu0 %452
  %v455 = vmul.f32 %v437, %v453
  %s456 = scalar_lea.vmem [#allocation3], 8
  %457 = vst.msk [vmem:[%s456] sm:$0xff] %vm223, %v455
  %s458 = scalar_lea.vmem [#allocation2], 32
  %v459 = vld [vmem:[%s458] sm:$0xff]
  %v460 = vld [vmem:[%s458 + $0x8] sm:$0xff]
  %v461 = vld [vmem:[%s2] sm:$0xff]
  %v462 = vld [vmem:[%s2 + $0x8] sm:$0xff]
  %v463 = vld [vmem:[%s2 + $0x10] sm:$0xff]
  %v464 = vld [vmem:[%s2 + $0x18] sm:$0xff]
  %v465 = vld [vmem:[%s2 + $0x20] sm:$0xff]
  %v466 = vld [vmem:[%s2 + $0x28] sm:$0xff]
  %v467 = vld [vmem:[%s2 + $0x30] sm:$0xff]
  %v468 = vld [vmem:[%s2 + $0x38] sm:$0xff]
  %v469 = vld [vmem:[%s2 + $0x40] sm:$0xff]
  %v470 = vld [vmem:[%s2 + $0x48] sm:$0xff]
  %v471 = vld [vmem:[%s2 + $0x50] sm:$0xff]
  %v472 = vld [vmem:[%s2 + $0x58] sm:$0xff]
  %v473 = vld [vmem:[%s2 + $0x60] sm:$0xff]
  %v474 = vld [vmem:[%s2 + $0x68] sm:$0xff]
  %v475 = vld [vmem:[%s2 + $0x70] sm:$0xff]
  %v476 = vld [vmem:[%s2 + $0x78] sm:$0xff]
  %v478 = vsel %vm223, %v455, 0
  %480 = vmatprep.subr.mxu0 0.0
  %481 = vmatpush1.msra.mxu0 0.0
  %482 = vmatprep.subr.mxu0 0.0
  %483 = vmatpush1.msra.mxu0 0.0
  %484 = vmatprep.subr.mxu0 0.0
  %485 = vmatpush1.msra.mxu0 0.0
  %486 = vmatprep.subr.mxu0 0.0
  %487 = vmatpush1.msra.mxu0 0.0
  %488 = vmatprep.subr.mxu0 0.0
  %489 = vmatpush1.msra.mxu0 0.0
  %490 = vmatprep.subr.mxu0 0.0
  %491 = vmatpush1.msra.mxu0 0.0
  %492 = vmatprep.subr.mxu0 0.0
  %493 = vmatpush1.msra.mxu0 0.0
  %494 = vmatprep.subr.mxu0 0.0
  %495 = vmatpush1.msra.mxu0 0.0
  %496 = vmatprep.subr.mxu0 %v476
  %497 = vmatpush1.msra.mxu0 %v475
  %498 = vmatprep.subr.mxu0 %v474
  %499 = vmatpush1.msra.mxu0 %v473
  %500 = vmatprep.subr.mxu0 %v472
  %501 = vmatpush1.msra.mxu0 %v471
  %502 = vmatprep.subr.mxu0 %v470
  %503 = vmatpush1.msra.mxu0 %v469
  %504 = vmatprep.subr.mxu0 %v468
  %505 = vmatpush1.msra.mxu0 %v467
  %506 = vmatprep.subr.mxu0 %v466
  %507 = vmatpush1.msra.mxu0 %v465
  %508 = vmatprep.subr.mxu0 %v464
  %509 = vmatpush1.msra.mxu0 %v463
  %510 = vmatprep.subr.mxu0 %v462
  %511 = vmatpush1.msra.mxu0 %v461
  %512 = vmatprep.subr.mxu0 0.0
  %513 = vmatpush2.msra.mxu0 0.0
  %514 = vmatprep.subr.mxu0 0.0
  %515 = vmatpush2.msra.mxu0 0.0
  %516 = vmatprep.subr.mxu0 0.0
  %517 = vmatpush2.msra.mxu0 0.0
  %518 = vmatprep.subr.mxu0 0.0
  %519 = vmatpush2.msra.mxu0 0.0
  %520 = vmatprep.subr.mxu0 0.0
  %521 = vmatpush2.msra.mxu0 0.0
  %522 = vmatprep.subr.mxu0 0.0
  %523 = vmatpush2.msra.mxu0 0.0
  %524 = vmatprep.subr.mxu0 0.0
  %525 = vmatpush2.msra.mxu0 0.0
  %526 = vmatprep.subr.mxu0 0.0
  %527 = vmatpush2.msra.mxu0 0.0
  %528 = vmatprep.subr.mxu0 0.0
  %529 = vmatpush2.msra.mxu0 0.0
  %530 = vmatprep.subr.mxu0 0.0
  %531 = vmatpush2.msra.mxu0 0.0
  %532 = vmatprep.subr.mxu0 0.0
  %533 = vmatpush2.msra.mxu0 0.0
  %534 = vmatprep.subr.mxu0 0.0
  %535 = vmatpush2.msra.mxu0 0.0
  %536 = vmatprep.subr.mxu0 0.0
  %537 = vmatpush2.msra.mxu0 0.0
  %538 = vmatprep.subr.mxu0 0.0
  %539 = vmatpush2.msra.mxu0 0.0
  %540 = vmatprep.subr.mxu0 0.0
  %541 = vmatpush2.msra.mxu0 0.0
  %542 = vmatprep.subr.mxu0 0.0
  %543 = vmatpush2.msra.mxu0 0.0
  %544 = vmatprep.mubr.f32.mxu0 0.0
  %545 = vmatmul.mubr.f32.gmra.mxu0 %v478
  %v546 = vpop.f32.mrf.mxu0
  %v547 = vadd.f32 0.0, %v546
  %v548 = vpop.f32.mrf.mxu0
  %v549 = vadd.f32 0.0, %v548
  %550 = vdwg.mxu0
  %v551 = vadd.f32 %v459, %v547
  %v552 = vadd.f32 %v460, %v549
  %v553 = vxor.u32 %v551, 2147483648
  %v554 = vxor.u32 %v552, 2147483648
  %v555 = vmul.f32 %v553, 1.442695
  %v556 = vpow.pop %v555
  %v557 = vmul.f32 %v554, 1.442695
  %v558 = vpow.pop %v557
  %v559 = vadd.f32 %v556, 1.0
  %v560 = vadd.f32 %v558, 1.0
  %v561 = vrcp.pop %v559
  %v562 = vmul.f32 1.0, %v561
  %v563 = vrcp.pop %v560
  %v564 = vmul.f32 1.0, %v563
  %v565 = vtanh.pop %v552
  %v566 = vmul.f32 %v562, %v449
  %568 = vrot.lane.b32.xlu0 %v565, 64
  %v569 = vpop.permute.xlu0 %568
  %v571 = vmul.f32 %v562, %v569
  %573 = vrot.lane.b32.xlu0 %v571, 64
  %v574 = vpop.permute.xlu0 %573
  %v576 = vadd.f32 %v566, %v574
  %v577 = vtanh.pop %v576
  %579 = vrot.lane.b32.xlu0 %v577, 64
  %v580 = vpop.permute.xlu0 %579
  %v582 = vmul.f32 %v564, %v580
  %s583 = scalar_lea.vmem [#allocation3], 16
  %584 = vst.msk [vmem:[%s583] sm:$0xff] %vm223, %v582
  %s585 = scalar_lea.vmem [#allocation2], 48
  %v586 = vld [vmem:[%s585] sm:$0xff]
  %v587 = vld [vmem:[%s585 + $0x8] sm:$0xff]
  %v588 = vld [vmem:[%s2] sm:$0xff]
  %v589 = vld [vmem:[%s2 + $0x8] sm:$0xff]
  %v590 = vld [vmem:[%s2 + $0x10] sm:$0xff]
  %v591 = vld [vmem:[%s2 + $0x18] sm:$0xff]
  %v592 = vld [vmem:[%s2 + $0x20] sm:$0xff]
  %v593 = vld [vmem:[%s2 + $0x28] sm:$0xff]
  %v594 = vld [vmem:[%s2 + $0x30] sm:$0xff]
  %v595 = vld [vmem:[%s2 + $0x38] sm:$0xff]
  %v596 = vld [vmem:[%s2 + $0x40] sm:$0xff]
  %v597 = vld [vmem:[%s2 + $0x48] sm:$0xff]
  %v598 = vld [vmem:[%s2 + $0x50] sm:$0xff]
  %v599 = vld [vmem:[%s2 + $0x58] sm:$0xff]
  %v600 = vld [vmem:[%s2 + $0x60] sm:$0xff]
  %v601 = vld [vmem:[%s2 + $0x68] sm:$0xff]
  %v602 = vld [vmem:[%s2 + $0x70] sm:$0xff]
  %v603 = vld [vmem:[%s2 + $0x78] sm:$0xff]
  %v605 = vsel %vm223, %v582, 0
  %607 = vmatprep.subr.mxu0 0.0
  %608 = vmatpush1.msra.mxu0 0.0
  %609 = vmatprep.subr.mxu0 0.0
  %610 = vmatpush1.msra.mxu0 0.0
  %611 = vmatprep.subr.mxu0 0.0
  %612 = vmatpush1.msra.mxu0 0.0
  %613 = vmatprep.subr.mxu0 0.0
  %614 = vmatpush1.msra.mxu0 0.0
  %615 = vmatprep.subr.mxu0 0.0
  %616 = vmatpush1.msra.mxu0 0.0
  %617 = vmatprep.subr.mxu0 0.0
  %618 = vmatpush1.msra.mxu0 0.0
  %619 = vmatprep.subr.mxu0 0.0
  %620 = vmatpush1.msra.mxu0 0.0
  %621 = vmatprep.subr.mxu0 0.0
  %622 = vmatpush1.msra.mxu0 0.0
  %623 = vmatprep.subr.mxu0 %v603
  %624 = vmatpush1.msra.mxu0 %v602
  %625 = vmatprep.subr.mxu0 %v601
  %626 = vmatpush1.msra.mxu0 %v600
  %627 = vmatprep.subr.mxu0 %v599
  %628 = vmatpush1.msra.mxu0 %v598
  %629 = vmatprep.subr.mxu0 %v597
  %630 = vmatpush1.msra.mxu0 %v596
  %631 = vmatprep.subr.mxu0 %v595
  %632 = vmatpush1.msra.mxu0 %v594
  %633 = vmatprep.subr.mxu0 %v593
  %634 = vmatpush1.msra.mxu0 %v592
  %635 = vmatprep.subr.mxu0 %v591
  %636 = vmatpush1.msra.mxu0 %v590
  %637 = vmatprep.subr.mxu0 %v589
  %638 = vmatpush1.msra.mxu0 %v588
  %639 = vmatprep.subr.mxu0 0.0
  %640 = vmatpush2.msra.mxu0 0.0
  %641 = vmatprep.subr.mxu0 0.0
  %642 = vmatpush2.msra.mxu0 0.0
  %643 = vmatprep.subr.mxu0 0.0
  %644 = vmatpush2.msra.mxu0 0.0
  %645 = vmatprep.subr.mxu0 0.0
  %646 = vmatpush2.msra.mxu0 0.0
  %647 = vmatprep.subr.mxu0 0.0
  %648 = vmatpush2.msra.mxu0 0.0
  %649 = vmatprep.subr.mxu0 0.0
  %650 = vmatpush2.msra.mxu0 0.0
  %651 = vmatprep.subr.mxu0 0.0
  %652 = vmatpush2.msra.mxu0 0.0
  %653 = vmatprep.subr.mxu0 0.0
  %654 = vmatpush2.msra.mxu0 0.0
  %655 = vmatprep.subr.mxu0 0.0
  %656 = vmatpush2.msra.mxu0 0.0
  %657 = vmatprep.subr.mxu0 0.0
  %658 = vmatpush2.msra.mxu0 0.0
  %659 = vmatprep.subr.mxu0 0.0
  %660 = vmatpush2.msra.mxu0 0.0
  %661 = vmatprep.subr.mxu0 0.0
  %662 = vmatpush2.msra.mxu0 0.0
  %663 = vmatprep.subr.mxu0 0.0
  %664 = vmatpush2.msra.mxu0 0.0
  %665 = vmatprep.subr.mxu0 0.0
  %666 = vmatpush2.msra.mxu0 0.0
  %667 = vmatprep.subr.mxu0 0.0
  %668 = vmatpush2.msra.mxu0 0.0
  %669 = vmatprep.subr.mxu0 0.0
  %670 = vmatpush2.msra.mxu0 0.0
  %671 = vmatprep.mubr.f32.mxu0 0.0
  %672 = vmatmul.mubr.f32.gmra.mxu0 %v605
  %v673 = vpop.f32.mrf.mxu0
  %v674 = vadd.f32 0.0, %v673
  %v675 = vpop.f32.mrf.mxu0
  %v676 = vadd.f32 0.0, %v675
  %677 = vdwg.mxu0
  %v678 = vadd.f32 %v586, %v674
  %v679 = vadd.f32 %v587, %v676
  %v680 = vxor.u32 %v678, 2147483648
  %v681 = vxor.u32 %v679, 2147483648
  %v682 = vmul.f32 %v680, 1.442695
  %v683 = vpow.pop %v682
  %v684 = vmul.f32 %v681, 1.442695
  %v685 = vpow.pop %v684
  %v686 = vadd.f32 %v683, 1.0
  %v687 = vadd.f32 %v685, 1.0
  %v688 = vrcp.pop %v686
  %v689 = vmul.f32 1.0, %v688
  %v690 = vrcp.pop %v687
  %v691 = vmul.f32 1.0, %v690
  %v692 = vtanh.pop %v679
  %v693 = vmul.f32 %v689, %v576
  %695 = vrot.lane.b32.xlu0 %v692, 64
  %v696 = vpop.permute.xlu0 %695
  %v698 = vmul.f32 %v689, %v696
  %700 = vrot.lane.b32.xlu0 %v698, 64
  %v701 = vpop.permute.xlu0 %700
  %v703 = vadd.f32 %v693, %v701
  %v704 = vtanh.pop %v703
  %706 = vrot.lane.b32.xlu0 %v704, 64
  %v707 = vpop.permute.xlu0 %706
  %v709 = vmul.f32 %v691, %v707
  %s710 = scalar_lea.vmem [#allocation3], 24
  %711 = vst.msk [vmem:[%s710] sm:$0xff] %vm223, %v709
  %s712 = scalar_lea.vmem [#allocation2], 64
  %v713 = vld [vmem:[%s712] sm:$0xff]
  %v714 = vld [vmem:[%s712 + $0x8] sm:$0xff]
  %v715 = vld [vmem:[%s2] sm:$0xff]
  %v716 = vld [vmem:[%s2 + $0x8] sm:$0xff]
  %v717 = vld [vmem:[%s2 + $0x10] sm:$0xff]
  %v718 = vld [vmem:[%s2 + $0x18] sm:$0xff]
  %v719 = vld [vmem:[%s2 + $0x20] sm:$0xff]
  %v720 = vld [vmem:[%s2 + $0x28] sm:$0xff]
  %v721 = vld [vmem:[%s2 + $0x30] sm:$0xff]
  %v722 = vld [vmem:[%s2 + $0x38] sm:$0xff]
  %v723 = vld [vmem:[%s2 + $0x40] sm:$0xff]
  %v724 = vld [vmem:[%s2 + $0x48] sm:$0xff]
  %v725 = vld [vmem:[%s2 + $0x50] sm:$0xff]
  %v726 = vld [vmem:[%s2 + $0x58] sm:$0xff]
  %v727 = vld [vmem:[%s2 + $0x60] sm:$0xff]
  %v728 = vld [vmem:[%s2 + $0x68] sm:$0xff]
  %v729 = vld [vmem:[%s2 + $0x70] sm:$0xff]
  %v730 = vld [vmem:[%s2 + $0x78] sm:$0xff]
  %v732 = vsel %vm223, %v709, 0
  %734 = vmatprep.subr.mxu0 0.0
  %735 = vmatpush1.msra.mxu0 0.0
  %736 = vmatprep.subr.mxu0 0.0
  %737 = vmatpush1.msra.mxu0 0.0
  %738 = vmatprep.subr.mxu0 0.0
  %739 = vmatpush1.msra.mxu0 0.0
  %740 = vmatprep.subr.mxu0 0.0
  %741 = vmatpush1.msra.mxu0 0.0
  %742 = vmatprep.subr.mxu0 0.0
  %743 = vmatpush1.msra.mxu0 0.0
  %744 = vmatprep.subr.mxu0 0.0
  %745 = vmatpush1.msra.mxu0 0.0
  %746 = vmatprep.subr.mxu0 0.0
  %747 = vmatpush1.msra.mxu0 0.0
  %748 = vmatprep.subr.mxu0 0.0
  %749 = vmatpush1.msra.mxu0 0.0
  %750 = vmatprep.subr.mxu0 %v730
  %751 = vmatpush1.msra.mxu0 %v729
  %752 = vmatprep.subr.mxu0 %v728
  %753 = vmatpush1.msra.mxu0 %v727
  %754 = vmatprep.subr.mxu0 %v726
  %755 = vmatpush1.msra.mxu0 %v725
  %756 = vmatprep.subr.mxu0 %v724
  %757 = vmatpush1.msra.mxu0 %v723
  %758 = vmatprep.subr.mxu0 %v722
  %759 = vmatpush1.msra.mxu0 %v721
  %760 = vmatprep.subr.mxu0 %v720
  %761 = vmatpush1.msra.mxu0 %v719
  %762 = vmatprep.subr.mxu0 %v718
  %763 = vmatpush1.msra.mxu0 %v717
  %764 = vmatprep.subr.mxu0 %v716
  %765 = vmatpush1.msra.mxu0 %v715
  %766 = vmatprep.subr.mxu0 0.0
  %767 = vmatpush2.msra.mxu0 0.0
  %768 = vmatprep.subr.mxu0 0.0
  %769 = vmatpush2.msra.mxu0 0.0
  %770 = vmatprep.subr.mxu0 0.0
  %771 = vmatpush2.msra.mxu0 0.0
  %772 = vmatprep.subr.mxu0 0.0
  %773 = vmatpush2.msra.mxu0 0.0
  %774 = vmatprep.subr.mxu0 0.0
  %775 = vmatpush2.msra.mxu0 0.0
  %776 = vmatprep.subr.mxu0 0.0
  %777 = vmatpush2.msra.mxu0 0.0
  %778 = vmatprep.subr.mxu0 0.0
  %779 = vmatpush2.msra.mxu0 0.0
  %780 = vmatprep.subr.mxu0 0.0
  %781 = vmatpush2.msra.mxu0 0.0
  %782 = vmatprep.subr.mxu0 0.0
  %783 = vmatpush2.msra.mxu0 0.0
  %784 = vmatprep.subr.mxu0 0.0
  %785 = vmatpush2.msra.mxu0 0.0
  %786 = vmatprep.subr.mxu0 0.0
  %787 = vmatpush2.msra.mxu0 0.0
  %788 = vmatprep.subr.mxu0 0.0
  %789 = vmatpush2.msra.mxu0 0.0
  %790 = vmatprep.subr.mxu0 0.0
  %791 = vmatpush2.msra.mxu0 0.0
  %792 = vmatprep.subr.mxu0 0.0
  %793 = vmatpush2.msra.mxu0 0.0
  %794 = vmatprep.subr.mxu0 0.0
  %795 = vmatpush2.msra.mxu0 0.0
  %796 = vmatprep.subr.mxu0 0.0
  %797 = vmatpush2.msra.mxu0 0.0
  %798 = vmatprep.mubr.f32.mxu0 0.0
  %799 = vmatmul.mubr.f32.gmra.mxu0 %v732
  %v800 = vpop.f32.mrf.mxu0
  %v801 = vadd.f32 0.0, %v800
  %v802 = vpop.f32.mrf.mxu0
  %v803 = vadd.f32 0.0, %v802
  %804 = vdwg.mxu0
  %v805 = vadd.f32 %v713, %v801
  %v806 = vadd.f32 %v714, %v803
  %v807 = vxor.u32 %v805, 2147483648
  %v808 = vxor.u32 %v806, 2147483648
  %v809 = vmul.f32 %v807, 1.442695
  %v810 = vpow.pop %v809
  %v811 = vmul.f32 %v808, 1.442695
  %v812 = vpow.pop %v811
  %v813 = vadd.f32 %v810, 1.0
  %v814 = vadd.f32 %v812, 1.0
  %v815 = vrcp.pop %v813
  %v816 = vmul.f32 1.0, %v815
  %v817 = vrcp.pop %v814
  %v818 = vmul.f32 1.0, %v817
  %v819 = vtanh.pop %v806
  %v820 = vmul.f32 %v816, %v703
  %822 = vrot.lane.b32.xlu0 %v819, 64
  %v823 = vpop.permute.xlu0 %822
  %v825 = vmul.f32 %v816, %v823
  %827 = vrot.lane.b32.xlu0 %v825, 64
  %v828 = vpop.permute.xlu0 %827
  %v830 = vadd.f32 %v820, %v828
  %v831 = vtanh.pop %v830
  %833 = vrot.lane.b32.xlu0 %v831, 64
  %v834 = vpop.permute.xlu0 %833
  %v836 = vmul.f32 %v818, %v834
  %s837 = scalar_lea.vmem [#allocation3], 32
  %838 = vst.msk [vmem:[%s837] sm:$0xff] %vm223, %v836
  %s839 = scalar_lea.vmem [#allocation2], 80
  %v840 = vld [vmem:[%s839] sm:$0xff]
  %v841 = vld [vmem:[%s839 + $0x8] sm:$0xff]
  %v842 = vld [vmem:[%s2] sm:$0xff]
  %v843 = vld [vmem:[%s2 + $0x8] sm:$0xff]
  %v844 = vld [vmem:[%s2 + $0x10] sm:$0xff]
  %v845 = vld [vmem:[%s2 + $0x18] sm:$0xff]
  %v846 = vld [vmem:[%s2 + $0x20] sm:$0xff]
  %v847 = vld [vmem:[%s2 + $0x28] sm:$0xff]
  %v848 = vld [vmem:[%s2 + $0x30] sm:$0xff]
  %v849 = vld [vmem:[%s2 + $0x38] sm:$0xff]
  %v850 = vld [vmem:[%s2 + $0x40] sm:$0xff]
  %v851 = vld [vmem:[%s2 + $0x48] sm:$0xff]
  %v852 = vld [vmem:[%s2 + $0x50] sm:$0xff]
  %v853 = vld [vmem:[%s2 + $0x58] sm:$0xff]
  %v854 = vld [vmem:[%s2 + $0x60] sm:$0xff]
  %v855 = vld [vmem:[%s2 + $0x68] sm:$0xff]
  %v856 = vld [vmem:[%s2 + $0x70] sm:$0xff]
  %v857 = vld [vmem:[%s2 + $0x78] sm:$0xff]
  %v859 = vsel %vm223, %v836, 0
  %861 = vmatprep.subr.mxu0 0.0
  %862 = vmatpush1.msra.mxu0 0.0
  %863 = vmatprep.subr.mxu0 0.0
  %864 = vmatpush1.msra.mxu0 0.0
  %865 = vmatprep.subr.mxu0 0.0
  %866 = vmatpush1.msra.mxu0 0.0
  %867 = vmatprep.subr.mxu0 0.0
  %868 = vmatpush1.msra.mxu0 0.0
  %869 = vmatprep.subr.mxu0 0.0
  %870 = vmatpush1.msra.mxu0 0.0
  %871 = vmatprep.subr.mxu0 0.0
  %872 = vmatpush1.msra.mxu0 0.0
  %873 = vmatprep.subr.mxu0 0.0
  %874 = vmatpush1.msra.mxu0 0.0
  %875 = vmatprep.subr.mxu0 0.0
  %876 = vmatpush1.msra.mxu0 0.0
  %877 = vmatprep.subr.mxu0 %v857
  %878 = vmatpush1.msra.mxu0 %v856
  %879 = vmatprep.subr.mxu0 %v855
  %880 = vmatpush1.msra.mxu0 %v854
  %881 = vmatprep.subr.mxu0 %v853
  %882 = vmatpush1.msra.mxu0 %v852
  %883 = vmatprep.subr.mxu0 %v851
  %884 = vmatpush1.msra.mxu0 %v850
  %885 = vmatprep.subr.mxu0 %v849
  %886 = vmatpush1.msra.mxu0 %v848
  %887 = vmatprep.subr.mxu0 %v847
  %888 = vmatpush1.msra.mxu0 %v846
  %889 = vmatprep.subr.mxu0 %v845
  %890 = vmatpush1.msra.mxu0 %v844
  %891 = vmatprep.subr.mxu0 %v843
  %892 = vmatpush1.msra.mxu0 %v842
  %893 = vmatprep.subr.mxu0 0.0
  %894 = vmatpush2.msra.mxu0 0.0
  %895 = vmatprep.subr.mxu0 0.0
  %896 = vmatpush2.msra.mxu0 0.0
  %897 = vmatprep.subr.mxu0 0.0
  %898 = vmatpush2.msra.mxu0 0.0
  %899 = vmatprep.subr.mxu0 0.0
  %900 = vmatpush2.msra.mxu0 0.0
  %901 = vmatprep.subr.mxu0 0.0
  %902 = vmatpush2.msra.mxu0 0.0
  %903 = vmatprep.subr.mxu0 0.0
  %904 = vmatpush2.msra.mxu0 0.0
  %905 = vmatprep.subr.mxu0 0.0
  %906 = vmatpush2.msra.mxu0 0.0
  %907 = vmatprep.subr.mxu0 0.0
  %908 = vmatpush2.msra.mxu0 0.0
  %909 = vmatprep.subr.mxu0 0.0
  %910 = vmatpush2.msra.mxu0 0.0
  %911 = vmatprep.subr.mxu0 0.0
  %912 = vmatpush2.msra.mxu0 0.0
  %913 = vmatprep.subr.mxu0 0.0
  %914 = vmatpush2.msra.mxu0 0.0
  %915 = vmatprep.subr.mxu0 0.0
  %916 = vmatpush2.msra.mxu0 0.0
  %917 = vmatprep.subr.mxu0 0.0
  %918 = vmatpush2.msra.mxu0 0.0
  %919 = vmatprep.subr.mxu0 0.0
  %920 = vmatpush2.msra.mxu0 0.0
  %921 = vmatprep.subr.mxu0 0.0
  %922 = vmatpush2.msra.mxu0 0.0
  %923 = vmatprep.subr.mxu0 0.0
  %924 = vmatpush2.msra.mxu0 0.0
  %925 = vmatprep.mubr.f32.mxu0 0.0
  %926 = vmatmul.mubr.f32.gmra.mxu0 %v859
  %v927 = vpop.f32.mrf.mxu0
  %v928 = vadd.f32 0.0, %v927
  %v929 = vpop.f32.mrf.mxu0
  %v930 = vadd.f32 0.0, %v929
  %931 = vdwg.mxu0
  %v932 = vadd.f32 %v840, %v928
  %v933 = vadd.f32 %v841, %v930
  %v934 = vxor.u32 %v932, 2147483648
  %v935 = vxor.u32 %v933, 2147483648
  %v936 = vmul.f32 %v934, 1.442695
  %v937 = vpow.pop %v936
  %v938 = vmul.f32 %v935, 1.442695
  %v939 = vpow.pop %v938
  %v940 = vadd.f32 %v937, 1.0
  %v941 = vadd.f32 %v939, 1.0
  %v942 = vrcp.pop %v940
  %v943 = vmul.f32 1.0, %v942
  %v944 = vrcp.pop %v941
  %v945 = vmul.f32 1.0, %v944
  %v946 = vtanh.pop %v933
  %v947 = vmul.f32 %v943, %v830
  %949 = vrot.lane.b32.xlu0 %v946, 64
  %v950 = vpop.permute.xlu0 %949
  %v952 = vmul.f32 %v943, %v950
  %954 = vrot.lane.b32.xlu0 %v952, 64
  %v955 = vpop.permute.xlu0 %954
  %v957 = vadd.f32 %v947, %v955
  %v958 = vtanh.pop %v957
  %960 = vrot.lane.b32.xlu0 %v958, 64
  %v961 = vpop.permute.xlu0 %960
  %v963 = vmul.f32 %v945, %v961
  %s964 = scalar_lea.vmem [#allocation3], 40
  %965 = vst.msk [vmem:[%s964] sm:$0xff] %vm223, %v963
  %s966 = scalar_lea.vmem [#allocation2], 96
  %v967 = vld [vmem:[%s966] sm:$0xff]
  %v968 = vld [vmem:[%s966 + $0x8] sm:$0xff]
  %v969 = vld [vmem:[%s2] sm:$0xff]
  %v970 = vld [vmem:[%s2 + $0x8] sm:$0xff]
  %v971 = vld [vmem:[%s2 + $0x10] sm:$0xff]
  %v972 = vld [vmem:[%s2 + $0x18] sm:$0xff]
  %v973 = vld [vmem:[%s2 + $0x20] sm:$0xff]
  %v974 = vld [vmem:[%s2 + $0x28] sm:$0xff]
  %v975 = vld [vmem:[%s2 + $0x30] sm:$0xff]
  %v976 = vld [vmem:[%s2 + $0x38] sm:$0xff]
  %v977 = vld [vmem:[%s2 + $0x40] sm:$0xff]
  %v978 = vld [vmem:[%s2 + $0x48] sm:$0xff]
  %v979 = vld [vmem:[%s2 + $0x50] sm:$0xff]
  %v980 = vld [vmem:[%s2 + $0x58] sm:$0xff]
  %v981 = vld [vmem:[%s2 + $0x60] sm:$0xff]
  %v982 = vld [vmem:[%s2 + $0x68] sm:$0xff]
  %v983 = vld [vmem:[%s2 + $0x70] sm:$0xff]
  %v984 = vld [vmem:[%s2 + $0x78] sm:$0xff]
  %v986 = vsel %vm223, %v963, 0
  %988 = vmatprep.subr.mxu0 0.0
  %989 = vmatpush1.msra.mxu0 0.0
  %990 = vmatprep.subr.mxu0 0.0
  %991 = vmatpush1.msra.mxu0 0.0
  %992 = vmatprep.subr.mxu0 0.0
  %993 = vmatpush1.msra.mxu0 0.0
  %994 = vmatprep.subr.mxu0 0.0
  %995 = vmatpush1.msra.mxu0 0.0
  %996 = vmatprep.subr.mxu0 0.0
  %997 = vmatpush1.msra.mxu0 0.0
  %998 = vmatprep.subr.mxu0 0.0
  %999 = vmatpush1.msra.mxu0 0.0
  %1000 = vmatprep.subr.mxu0 0.0
  %1001 = vmatpush1.msra.mxu0 0.0
  %1002 = vmatprep.subr.mxu0 0.0
  %1003 = vmatpush1.msra.mxu0 0.0
  %1004 = vmatprep.subr.mxu0 %v984
  %1005 = vmatpush1.msra.mxu0 %v983
  %1006 = vmatprep.subr.mxu0 %v982
  %1007 = vmatpush1.msra.mxu0 %v981
  %1008 = vmatprep.subr.mxu0 %v980
  %1009 = vmatpush1.msra.mxu0 %v979
  %1010 = vmatprep.subr.mxu0 %v978
  %1011 = vmatpush1.msra.mxu0 %v977
  %1012 = vmatprep.subr.mxu0 %v976
  %1013 = vmatpush1.msra.mxu0 %v975
  %1014 = vmatprep.subr.mxu0 %v974
  %1015 = vmatpush1.msra.mxu0 %v973
  %1016 = vmatprep.subr.mxu0 %v972
  %1017 = vmatpush1.msra.mxu0 %v971
  %1018 = vmatprep.subr.mxu0 %v970
  %1019 = vmatpush1.msra.mxu0 %v969
  %1020 = vmatprep.subr.mxu0 0.0
  %1021 = vmatpush2.msra.mxu0 0.0
  %1022 = vmatprep.subr.mxu0 0.0
  %1023 = vmatpush2.msra.mxu0 0.0
  %1024 = vmatprep.subr.mxu0 0.0
  %1025 = vmatpush2.msra.mxu0 0.0
  %1026 = vmatprep.subr.mxu0 0.0
  %1027 = vmatpush2.msra.mxu0 0.0
  %1028 = vmatprep.subr.mxu0 0.0
  %1029 = vmatpush2.msra.mxu0 0.0
  %1030 = vmatprep.subr.mxu0 0.0
  %1031 = vmatpush2.msra.mxu0 0.0
  %1032 = vmatprep.subr.mxu0 0.0
  %1033 = vmatpush2.msra.mxu0 0.0
  %1034 = vmatprep.subr.mxu0 0.0
  %1035 = vmatpush2.msra.mxu0 0.0
  %1036 = vmatprep.subr.mxu0 0.0
  %1037 = vmatpush2.msra.mxu0 0.0
  %1038 = vmatprep.subr.mxu0 0.0
  %1039 = vmatpush2.msra.mxu0 0.0
  %1040 = vmatprep.subr.mxu0 0.0
  %1041 = vmatpush2.msra.mxu0 0.0
  %1042 = vmatprep.subr.mxu0 0.0
  %1043 = vmatpush2.msra.mxu0 0.0
  %1044 = vmatprep.subr.mxu0 0.0
  %1045 = vmatpush2.msra.mxu0 0.0
  %1046 = vmatprep.subr.mxu0 0.0
  %1047 = vmatpush2.msra.mxu0 0.0
  %1048 = vmatprep.subr.mxu0 0.0
  %1049 = vmatpush2.msra.mxu0 0.0
  %1050 = vmatprep.subr.mxu0 0.0
  %1051 = vmatpush2.msra.mxu0 0.0
  %1052 = vmatprep.mubr.f32.mxu0 0.0
  %1053 = vmatmul.mubr.f32.gmra.mxu0 %v986
  %v1054 = vpop.f32.mrf.mxu0
  %v1055 = vadd.f32 0.0, %v1054
  %v1056 = vpop.f32.mrf.mxu0
  %v1057 = vadd.f32 0.0, %v1056
  %1058 = vdwg.mxu0
  %v1059 = vadd.f32 %v967, %v1055
  %v1060 = vadd.f32 %v968, %v1057
  %v1061 = vxor.u32 %v1059, 2147483648
  %v1062 = vxor.u32 %v1060, 2147483648
  %v1063 = vmul.f32 %v1061, 1.442695
  %v1064 = vpow.pop %v1063
  %v1065 = vmul.f32 %v1062, 1.442695
  %v1066 = vpow.pop %v1065
  %v1067 = vadd.f32 %v1064, 1.0
  %v1068 = vadd.f32 %v1066, 1.0
  %v1069 = vrcp.pop %v1067
  %v1070 = vmul.f32 1.0, %v1069
  %v1071 = vrcp.pop %v1068
  %v1072 = vmul.f32 1.0, %v1071
  %v1073 = vtanh.pop %v1060
  %v1074 = vmul.f32 %v1070, %v957
  %1076 = vrot.lane.b32.xlu0 %v1073, 64
  %v1077 = vpop.permute.xlu0 %1076
  %v1079 = vmul.f32 %v1070, %v1077
  %1081 = vrot.lane.b32.xlu0 %v1079, 64
  %v1082 = vpop.permute.xlu0 %1081
  %v1084 = vadd.f32 %v1074, %v1082
  %v1085 = vtanh.pop %v1084
  %1087 = vrot.lane.b32.xlu0 %v1085, 64
  %v1088 = vpop.permute.xlu0 %1087
  %v1090 = vmul.f32 %v1072, %v1088
  %s1091 = scalar_lea.vmem [#allocation3], 48
  %1092 = vst.msk [vmem:[%s1091] sm:$0xff] %vm223, %v1090
  %s1093 = scalar_lea.vmem [#allocation2], 112
  %v1094 = vld [vmem:[%s1093] sm:$0xff]
  %v1095 = vld [vmem:[%s1093 + $0x8] sm:$0xff]
  %v1096 = vld [vmem:[%s2] sm:$0xff]
  %v1097 = vld [vmem:[%s2 + $0x8] sm:$0xff]
  %v1098 = vld [vmem:[%s2 + $0x10] sm:$0xff]
  %v1099 = vld [vmem:[%s2 + $0x18] sm:$0xff]
  %v1100 = vld [vmem:[%s2 + $0x20] sm:$0xff]
  %v1101 = vld [vmem:[%s2 + $0x28] sm:$0xff]
  %v1102 = vld [vmem:[%s2 + $0x30] sm:$0xff]
  %v1103 = vld [vmem:[%s2 + $0x38] sm:$0xff]
  %v1104 = vld [vmem:[%s2 + $0x40] sm:$0xff]
  %v1105 = vld [vmem:[%s2 + $0x48] sm:$0xff]
  %v1106 = vld [vmem:[%s2 + $0x50] sm:$0xff]
  %v1107 = vld [vmem:[%s2 + $0x58] sm:$0xff]
  %v1108 = vld [vmem:[%s2 + $0x60] sm:$0xff]
  %v1109 = vld [vmem:[%s2 + $0x68] sm:$0xff]
  %v1110 = vld [vmem:[%s2 + $0x70] sm:$0xff]
  %v1111 = vld [vmem:[%s2 + $0x78] sm:$0xff]
  %v1113 = vsel %vm223, %v1090, 0
  %1115 = vmatprep.subr.mxu0 0.0
  %1116 = vmatpush1.msra.mxu0 0.0
  %1117 = vmatprep.subr.mxu0 0.0
  %1118 = vmatpush1.msra.mxu0 0.0
  %1119 = vmatprep.subr.mxu0 0.0
  %1120 = vmatpush1.msra.mxu0 0.0
  %1121 = vmatprep.subr.mxu0 0.0
  %1122 = vmatpush1.msra.mxu0 0.0
  %1123 = vmatprep.subr.mxu0 0.0
  %1124 = vmatpush1.msra.mxu0 0.0
  %1125 = vmatprep.subr.mxu0 0.0
  %1126 = vmatpush1.msra.mxu0 0.0
  %1127 = vmatprep.subr.mxu0 0.0
  %1128 = vmatpush1.msra.mxu0 0.0
  %1129 = vmatprep.subr.mxu0 0.0
  %1130 = vmatpush1.msra.mxu0 0.0
  %1131 = vmatprep.subr.mxu0 %v1111
  %1132 = vmatpush1.msra.mxu0 %v1110
  %1133 = vmatprep.subr.mxu0 %v1109
  %1134 = vmatpush1.msra.mxu0 %v1108
  %1135 = vmatprep.subr.mxu0 %v1107
  %1136 = vmatpush1.msra.mxu0 %v1106
  %1137 = vmatprep.subr.mxu0 %v1105
  %1138 = vmatpush1.msra.mxu0 %v1104
  %1139 = vmatprep.subr.mxu0 %v1103
  %1140 = vmatpush1.msra.mxu0 %v1102
  %1141 = vmatprep.subr.mxu0 %v1101
  %1142 = vmatpush1.msra.mxu0 %v1100
  %1143 = vmatprep.subr.mxu0 %v1099
  %1144 = vmatpush1.msra.mxu0 %v1098
  %1145 = vmatprep.subr.mxu0 %v1097
  %1146 = vmatpush1.msra.mxu0 %v1096
  %1147 = vmatprep.subr.mxu0 0.0
  %1148 = vmatpush2.msra.mxu0 0.0
  %1149 = vmatprep.subr.mxu0 0.0
  %1150 = vmatpush2.msra.mxu0 0.0
  %1151 = vmatprep.subr.mxu0 0.0
  %1152 = vmatpush2.msra.mxu0 0.0
  %1153 = vmatprep.subr.mxu0 0.0
  %1154 = vmatpush2.msra.mxu0 0.0
  %1155 = vmatprep.subr.mxu0 0.0
  %1156 = vmatpush2.msra.mxu0 0.0
  %1157 = vmatprep.subr.mxu0 0.0
  %1158 = vmatpush2.msra.mxu0 0.0
  %1159 = vmatprep.subr.mxu0 0.0
  %1160 = vmatpush2.msra.mxu0 0.0
  %1161 = vmatprep.subr.mxu0 0.0
  %1162 = vmatpush2.msra.mxu0 0.0
  %1163 = vmatprep.subr.mxu0 0.0
  %1164 = vmatpush2.msra.mxu0 0.0
  %1165 = vmatprep.subr.mxu0 0.0
  %1166 = vmatpush2.msra.mxu0 0.0
  %1167 = vmatprep.subr.mxu0 0.0
  %1168 = vmatpush2.msra.mxu0 0.0
  %1169 = vmatprep.subr.mxu0 0.0
  %1170 = vmatpush2.msra.mxu0 0.0
  %1171 = vmatprep.subr.mxu0 0.0
  %1172 = vmatpush2.msra.mxu0 0.0
  %1173 = vmatprep.subr.mxu0 0.0
  %1174 = vmatpush2.msra.mxu0 0.0
  %1175 = vmatprep.subr.mxu0 0.0
  %1176 = vmatpush2.msra.mxu0 0.0
  %1177 = vmatprep.subr.mxu0 0.0
  %1178 = vmatpush2.msra.mxu0 0.0
  %1179 = vmatprep.mubr.f32.mxu0 0.0
  %1180 = vmatmul.mubr.f32.gmra.mxu0 %v1113
  %v1181 = vpop.f32.mrf.mxu0
  %v1182 = vadd.f32 0.0, %v1181
  %v1183 = vpop.f32.mrf.mxu0
  %v1184 = vadd.f32 0.0, %v1183
  %1185 = vdwg.mxu0
  %v1186 = vadd.f32 %v1094, %v1182
  %v1187 = vadd.f32 %v1095, %v1184
  %v1188 = vxor.u32 %v1186, 2147483648
  %v1189 = vxor.u32 %v1187, 2147483648
  %v1190 = vmul.f32 %v1188, 1.442695
  %v1191 = vpow.pop %v1190
  %v1192 = vmul.f32 %v1189, 1.442695
  %v1193 = vpow.pop %v1192
  %v1194 = vadd.f32 %v1191, 1.0
  %v1195 = vadd.f32 %v1193, 1.0
  %v1196 = vrcp.pop %v1194
  %v1197 = vmul.f32 1.0, %v1196
  %v1198 = vrcp.pop %v1195
  %v1199 = vmul.f32 1.0, %v1198
  %v1200 = vtanh.pop %v1187
  %v1201 = vmul.f32 %v1197, %v1084
  %1203 = vrot.lane.b32.xlu0 %v1200, 64
  %v1204 = vpop.permute.xlu0 %1203
  %v1206 = vmul.f32 %v1197, %v1204
  %1208 = vrot.lane.b32.xlu0 %v1206, 64
  %v1209 = vpop.permute.xlu0 %1208
  %v1211 = vadd.f32 %v1201, %v1209
  %v1212 = vtanh.pop %v1211
  %1214 = vrot.lane.b32.xlu0 %v1212, 64
  %v1215 = vpop.permute.xlu0 %1214
  %v1217 = vmul.f32 %v1199, %v1215
  %s1218 = scalar_lea.vmem [#allocation3], 56
  %1219 = vst.msk [vmem:[%s1218] sm:$0xff] %vm223, %v1217
  %v1220 = vld [vmem:[#allocation3] sm:$0xff]
  %v1221 = vld [vmem:[#allocation3 + $0x8] sm:$0xff]
  %v1222 = vld [vmem:[#allocation3 + $0x10] sm:$0xff]
  %v1223 = vld [vmem:[#allocation3 + $0x18] sm:$0xff]
  %v1224 = vld [vmem:[#allocation3 + $0x20] sm:$0xff]
  %v1225 = vld [vmem:[#allocation3 + $0x28] sm:$0xff]
  %v1226 = vld [vmem:[#allocation3 + $0x30] sm:$0xff]
  %v1227 = vld [vmem:[#allocation3 + $0x38] sm:$0xff]
  %v1228 = vld [vmem:[%s4] sm:$0xff]
  %v1229 = vld [vmem:[%s4 + $0x8] sm:$0xff]
  %v1230 = vld [vmem:[%s4 + $0x10] sm:$0xff]
  %v1231 = vld [vmem:[%s4 + $0x18] sm:$0xff]
  %v1232 = vld [vmem:[%s4 + $0x20] sm:$0xff]
  %v1233 = vld [vmem:[%s4 + $0x28] sm:$0xff]
  %v1234 = vld [vmem:[%s4 + $0x30] sm:$0xff]
  %v1235 = vld [vmem:[%s4 + $0x38] sm:$0xff]
  %v1236 = vld [vmem:[%s5] sm:$0x1]
  %v1238 = vlaneseq
  %v1239 = vshrl.u32 %v1238, 7
  %v1240 = vsub.s32 0, %v1239
  %v1241 = vrot.slane %v1236, %v1240
  %v1244 = vsel %vm223, %v1220, 0
  %v1247 = vsel %vm223, %v1221, 0
  %v1250 = vsel %vm223, %v1222, 0
  %v1253 = vsel %vm223, %v1223, 0
  %v1256 = vsel %vm223, %v1224, 0
  %v1259 = vsel %vm223, %v1225, 0
  %v1262 = vsel %vm223, %v1226, 0
  %v1265 = vsel %vm223, %v1227, 0
  %1267 = vmatprep.subr.mxu0 0.0
  %1268 = vmatpush1.msra.mxu0 0.0
  %1269 = vmatprep.subr.mxu0 0.0
  %1270 = vmatpush1.msra.mxu0 0.0
  %1271 = vmatprep.subr.mxu0 0.0
  %1272 = vmatpush1.msra.mxu0 0.0
  %1273 = vmatprep.subr.mxu0 0.0
  %1274 = vmatpush1.msra.mxu0 0.0
  %1275 = vmatprep.subr.mxu0 0.0
  %1276 = vmatpush1.msra.mxu0 0.0
  %1277 = vmatprep.subr.mxu0 0.0
  %1278 = vmatpush1.msra.mxu0 0.0
  %1279 = vmatprep.subr.mxu0 0.0
  %1280 = vmatpush1.msra.mxu0 0.0
  %1281 = vmatprep.subr.mxu0 0.0
  %1282 = vmatpush1.msra.mxu0 0.0
  %1283 = vmatprep.subr.mxu0 0.0
  %1284 = vmatpush1.msra.mxu0 %v1235
  %1285 = vmatprep.subr.mxu0 0.0
  %1286 = vmatpush1.msra.mxu0 %v1234
  %1287 = vmatprep.subr.mxu0 0.0
  %1288 = vmatpush1.msra.mxu0 %v1233
  %1289 = vmatprep.subr.mxu0 0.0
  %1290 = vmatpush1.msra.mxu0 %v1232
  %1291 = vmatprep.subr.mxu0 0.0
  %1292 = vmatpush1.msra.mxu0 %v1231
  %1293 = vmatprep.subr.mxu0 0.0
  %1294 = vmatpush1.msra.mxu0 %v1230
  %1295 = vmatprep.subr.mxu0 0.0
  %1296 = vmatpush1.msra.mxu0 %v1229
  %1297 = vmatprep.subr.mxu0 0.0
  %1298 = vmatpush1.msra.mxu0 %v1228
  %1299 = vmatprep.subr.mxu0 0.0
  %1300 = vmatpush2.msra.mxu0 0.0
  %1301 = vmatprep.subr.mxu0 0.0
  %1302 = vmatpush2.msra.mxu0 0.0
  %1303 = vmatprep.subr.mxu0 0.0
  %1304 = vmatpush2.msra.mxu0 0.0
  %1305 = vmatprep.subr.mxu0 0.0
  %1306 = vmatpush2.msra.mxu0 0.0
  %1307 = vmatprep.subr.mxu0 0.0
  %1308 = vmatpush2.msra.mxu0 0.0
  %1309 = vmatprep.subr.mxu0 0.0
  %1310 = vmatpush2.msra.mxu0 0.0
  %1311 = vmatprep.subr.mxu0 0.0
  %1312 = vmatpush2.msra.mxu0 0.0
  %1313 = vmatprep.subr.mxu0 0.0
  %1314 = vmatpush2.msra.mxu0 0.0
  %1315 = vmatprep.subr.mxu0 0.0
  %1316 = vmatpush2.msra.mxu0 0.0
  %1317 = vmatprep.subr.mxu0 0.0
  %1318 = vmatpush2.msra.mxu0 0.0
  %1319 = vmatprep.subr.mxu0 0.0
  %1320 = vmatpush2.msra.mxu0 0.0
  %1321 = vmatprep.subr.mxu0 0.0
  %1322 = vmatpush2.msra.mxu0 0.0
  %1323 = vmatprep.subr.mxu0 0.0
  %1324 = vmatpush2.msra.mxu0 0.0
  %1325 = vmatprep.subr.mxu0 0.0
  %1326 = vmatpush2.msra.mxu0 0.0
  %1327 = vmatprep.subr.mxu0 0.0
  %1328 = vmatpush2.msra.mxu0 0.0
  %1329 = vmatprep.subr.mxu0 0.0
  %1330 = vmatpush2.msra.mxu0 0.0
  %1331 = vmatprep.mubr.f32.mxu0 0.0
  %1332 = vmatmul.mubr.f32.gmra.mxu0 %v1244
  %v1333 = vpop.f32.mrf.mxu0
  %v1334 = vadd.f32 %v1241, %v1333
  %v1335 = vpop.f32.mrf.mxu0
  %1336 = vmatprep.mubr.f32.mxu0 0.0
  %1337 = vmatmul.mubr.f32.gmra.mxu0 %v1247
  %v1338 = vpop.f32.mrf.mxu0
  %v1339 = vadd.f32 %v1241, %v1338
  %v1340 = vpop.f32.mrf.mxu0
  %1341 = vmatprep.mubr.f32.mxu0 0.0
  %1342 = vmatmul.mubr.f32.gmra.mxu0 %v1250
  %v1343 = vpop.f32.mrf.mxu0
  %v1344 = vadd.f32 %v1241, %v1343
  %v1345 = vpop.f32.mrf.mxu0
  %1346 = vmatprep.mubr.f32.mxu0 0.0
  %1347 = vmatmul.mubr.f32.gmra.mxu0 %v1253
  %v1348 = vpop.f32.mrf.mxu0
  %v1349 = vadd.f32 %v1241, %v1348
  %v1350 = vpop.f32.mrf.mxu0
  %1351 = vmatprep.mubr.f32.mxu0 0.0
  %1352 = vmatmul.mubr.f32.gmra.mxu0 %v1256
  %v1353 = vpop.f32.mrf.mxu0
  %v1354 = vadd.f32 %v1241, %v1353
  %v1355 = vpop.f32.mrf.mxu0
  %1356 = vmatprep.mubr.f32.mxu0 0.0
  %1357 = vmatmul.mubr.f32.gmra.mxu0 %v1259
  %v1358 = vpop.f32.mrf.mxu0
  %v1359 = vadd.f32 %v1241, %v1358
  %v1360 = vpop.f32.mrf.mxu0
  %1361 = vmatprep.mubr.f32.mxu0 0.0
  %1362 = vmatmul.mubr.f32.gmra.mxu0 %v1262
  %v1363 = vpop.f32.mrf.mxu0
  %v1364 = vadd.f32 %v1241, %v1363
  %v1365 = vpop.f32.mrf.mxu0
  %1366 = vmatprep.mubr.f32.mxu0 0.0
  %1367 = vmatmul.mubr.f32.gmra.mxu0 %v1265
  %v1368 = vpop.f32.mrf.mxu0
  %v1369 = vadd.f32 %v1241, %v1368
  %v1370 = vpop.f32.mrf.mxu0
  %1371 = vdwg.mxu0
  %1372 = vst.msk [vmem:[%s6] sm:$0xff] %vm46, %v1334
  %1373 = vst.msk [vmem:[%s6 + $0x8] sm:$0xff] %vm46, %v1339
  %1374 = vst.msk [vmem:[%s6 + $0x10] sm:$0xff] %vm46, %v1344
  %1375 = vst.msk [vmem:[%s6 + $0x18] sm:$0xff] %vm46, %v1349
  %1376 = vst.msk [vmem:[%s6 + $0x20] sm:$0xff] %vm46, %v1354
  %1377 = vst.msk [vmem:[%s6 + $0x28] sm:$0xff] %vm46, %v1359
  %1378 = vst.msk [vmem:[%s6 + $0x30] sm:$0xff] %vm46, %v1364
  %1379 = vst.msk [vmem:[%s6 + $0x38] sm:$0xff] %vm46, %v1369
  // Predicated region
  $region26: #{tpu_custom_call.1} parent=0 // pred_check
    _
  $region27: #{tpu_custom_call.1} parent=0 // pred_check_branch
    %1381 = sbr.rel (0) target = $region29
  $region28: #{tpu_custom_call.1} parent=0 // pred_region
    _
  $region29: #{tpu_custom_call.1} parent=0 // pred_fallthru
    _
  // Predicated region
  $region30: #{tpu_custom_call.1} parent=0 // pred_check
    _
  $region31: #{tpu_custom_call.1} parent=0 // pred_check_branch
    %1383 = sbr.rel (0) target = $region33
  $region32: #{tpu_custom_call.1} parent=0 // pred_region
    _
  $region33: #{tpu_custom_call.1} parent=0 // pred_fallthru
    _

</llo_original>
